<compile_context>
chip_gen: v5e
topology: v5e:2x2
jax: 0.10.0
libtpu: 0.0.40
codegen_flags: <defaults>
</compile_context>

<pallas_src>
import jax
import jax.numpy as jnp
from jax.experimental import pallas as pl
from jax.experimental.pallas import tpu as pltpu


def _round_up(n, m):
    return (n + m - 1) // m * m


def _choose_tile_hw(HW, BB, K_pad, F_pad, budget_bytes=12 * 2**20):
    """Largest multiple-of-8 divisor of HW whose per-step footprint
    (double-buffered bf16 xcol tile + f32 feature intermediate) fits the budget.
    Falls back to the full HW extent (always a legal block shape)."""
    def cost(t):
        return 2 * BB * t * K_pad * 2 + BB * t * F_pad * 4
    for t in range(HW, 0, -1):
        if HW % t == 0 and t % 8 == 0 and cost(t) <= budget_bytes:
            return t
    # TODO(synk): for HW with no multiple-of-8 divisor in budget (e.g. 14*14=196),
    # pad HW and mask the padded rows instead of one full-extent block.
    return HW


def timm_model_forward(x_nchw, conv_w, conv_b, head_w, head_b):
    """x_nchw: [B, C, H, W] float32. Returns logits [B, num_classes]."""
    B, C, H, W = x_nchw.shape
    F = conv_w.shape[0]          # num_features
    K = conv_w.shape[2]          # kernel size (3)
    NC = head_w.shape[1]         # num_classes
    HW = H * W
    KKC = K * K * C

    # Lane-dense padded dims (zero padding contributes nothing; sliced at the end).
    K_pad = _round_up(KKC, 128)
    F_pad = _round_up(F, 128)
    NC_pad = _round_up(NC, 128)

    BB = 8                       # batch block -> sublane-dense (8, *) output blocks
    B_pad = _round_up(B, BB)
    n_b = B_pad // BB

    TILE_HW = _choose_tile_hw(HW, BB, K_pad, F_pad)
    n_t = HW // TILE_HW
    inv_hw = 1.0 / float(HW)

    # ---- wrapper glue: NCHW -> NHWC (bf16 early), SAME pad, im2col, batch pad ----
    x = jnp.transpose(x_nchw, (0, 2, 3, 1)).astype(jnp.bfloat16)        # [B,H,W,C]
    xp = jnp.pad(x, ((0, 0), (1, 1), (1, 1), (0, 0)))
    cols = [xp[:, kh:kh + H, kw:kw + W, :] for kh in range(K) for kw in range(K)]
    if K_pad > KKC:
        cols.append(jnp.zeros((B, H, W, K_pad - KKC), jnp.bfloat16))     # fold K-pad
    xcol = jnp.concatenate(cols, axis=-1).reshape(B, HW, K_pad)          # [B,HW,K_pad]
    if B_pad > B:
        xcol = jnp.pad(xcol, ((0, B_pad - B), (0, 0), (0, 0)))           # zero images
    # TODO(synk): at real backbone shapes build these patches in-kernel from a
    # resident NHWC halo tile instead of materializing xcol in HBM.

    # Conv weight [F, C, K, K] -> [K*K*C, F] matching im2col (kh, kw, c) order.
    wc = jnp.transpose(conv_w, (2, 3, 1, 0)).reshape(KKC, F)
    wc_p = jnp.pad(wc, ((0, K_pad - KKC), (0, F_pad - F))).astype(jnp.bfloat16)
    bc_p = jnp.pad(conv_b, (0, F_pad - F)).reshape(1, F_pad).astype(jnp.float32)
    wh_p = jnp.pad(head_w, ((0, F_pad - F), (0, NC_pad - NC))).astype(jnp.float32)
    bh_p = jnp.pad(head_b, (0, NC_pad - NC)).reshape(1, NC_pad).astype(jnp.float32)

    # ---- fused kernel: conv-GEMM + bias + ReLU + GAP accumulate + head GEMM ----
    def fused_kernel(xcol_ref, wc_ref, bc_ref, wh_ref, bh_ref, logits_ref, pooled_acc):
        # xcol_ref:   (BB, TILE_HW, K_pad) bf16  im2col rows for 8 images, 1 HW tile
        # wc_ref:     (K_pad, F_pad)       bf16  conv weight (resident)
        # bc_ref:     (1, F_pad)           f32   conv bias
        # wh_ref:     (F_pad, NC_pad)      f32   head weight (resident)
        # bh_ref:     (1, NC_pad)          f32   head bias
        # logits_ref: (BB, NC_pad)         f32   output block (resident across t)
        # pooled_acc: (BB, F_pad)          f32   per-image GAP accumulator (scratch)
        t = pl.program_id(1)

        @pl.when(t == 0)
        def _init():
            pooled_acc[...] = jnp.zeros_like(pooled_acc)

        # One lane-dense GEMM over the whole (BB*TILE_HW)-row slab (MXU, f32 acc).
        xt = xcol_ref[...].reshape(BB * TILE_HW, K_pad)      # sublane-aligned merge
        feat = jnp.dot(xt, wc_ref[...], preferred_element_type=jnp.float32)
        feat = jnp.maximum(feat + bc_ref[...], 0.0)          # bias + ReLU (VPU)
        # Per-image spatial partial sums accumulated into the resident scratch.
        pooled_acc[...] += jnp.sum(feat.reshape(BB, TILE_HW, F_pad), axis=1)

        @pl.when(t == pl.num_programs(1) - 1)
        def _finalize():
            pooled = pooled_acc[...] * inv_hw                # GAP: mean = sum / HW
            logits_ref[...] = (jnp.dot(pooled, wh_ref[...],
                                       preferred_element_type=jnp.float32)
                               + bh_ref[...])                # fused linear head

    # Explicit VMEM budget (portable to v7x's 64 MiB physical / 32 MiB default scope).
    xcol_tile = BB * TILE_HW * K_pad * 2
    feat_tmp = BB * TILE_HW * F_pad * 4
    weights = K_pad * F_pad * 2 + F_pad * 4 + F_pad * NC_pad * 4 + NC_pad * 4
    out_tile = BB * NC_pad * 4
    scratch = BB * F_pad * 4
    need = 2 * xcol_tile + 2 * weights + 2 * out_tile + scratch + feat_tmp
    vmem_limit = int(min(64 * 2**20, max(16 * 2**20, 2 * need)))

    # Advisory cost with true (unpadded) work.
    flops = 2 * B * HW * KKC * F + 2 * B * HW * F + 2 * B * F * NC
    bytes_accessed = (B * HW * KKC * 2 + KKC * F * 2 + F * 4
                      + F * NC * 4 + NC * 4 + B * NC * 4)

    logits_p = pl.pallas_call(
        fused_kernel,
        out_shape=jax.ShapeDtypeStruct((B_pad, NC_pad), jnp.float32),
        grid_spec=pltpu.PrefetchScalarGridSpec(
            num_scalar_prefetch=0,
            grid=(n_b, n_t),
            in_specs=[
                pl.BlockSpec((BB, TILE_HW, K_pad), lambda nb, t: (nb, t, 0)),
                pl.BlockSpec((K_pad, F_pad), lambda nb, t: (0, 0)),
                pl.BlockSpec((1, F_pad), lambda nb, t: (0, 0)),
                pl.BlockSpec((F_pad, NC_pad), lambda nb, t: (0, 0)),
                pl.BlockSpec((1, NC_pad), lambda nb, t: (0, 0)),
            ],
            out_specs=pl.BlockSpec((BB, NC_pad), lambda nb, t: (nb, 0)),
            scratch_shapes=[pltpu.VMEM((BB, F_pad), jnp.float32)],
        ),
        compiler_params=pltpu.CompilerParams(
            dimension_semantics=("parallel", "arbitrary"),
            vmem_limit_bytes=vmem_limit),
        cost_estimate=pl.CostEstimate(flops=flops, transcendentals=0,
                                      bytes_accessed=bytes_accessed),
    )(xcol, wc_p, bc_p, wh_p, bh_p)

    return logits_p[:B, :NC]


def _reference_forward(x_nchw, conv_w, conv_b, head_w, head_b):
    """Pure-JAX f32 reference for correctness check."""
    x = jnp.transpose(x_nchw, (0, 2, 3, 1))
    y = jax.lax.conv_general_dilated(
        x, jnp.transpose(conv_w, (2, 3, 1, 0)),  # HWIO
        window_strides=(1, 1), padding="SAME",
        dimension_numbers=("NHWC", "HWIO", "NHWC"))
    y = jax.nn.relu(y + conv_b[None, None, None, :])
    feat = jnp.mean(y, axis=(1, 2))              # [B, F]
    return feat @ head_w + head_b[None, :]


if __name__ == "__main__":
    # Small shapes consistent with the module's forward: image batch -> logits.
    B, C, H, W = 2, 4, 16, 16
    NUM_FEATURES = 32          # encoder.num_features (synthetic)
    NUM_CLASSES = 10

    key = jax.random.PRNGKey(0)
    kx, kw, kb, khw, khb = jax.random.split(key, 5)

    x = jax.random.normal(kx, (B, C, H, W), dtype=jnp.float32)
    conv_w = 0.1 * jax.random.normal(kw, (NUM_FEATURES, C, 3, 3), dtype=jnp.float32)
    conv_b = 0.01 * jax.random.normal(kb, (NUM_FEATURES,), dtype=jnp.float32)
    head_w = 0.1 * jax.random.normal(khw, (NUM_FEATURES, NUM_CLASSES), dtype=jnp.float32)
    head_b = 0.01 * jax.random.normal(khb, (NUM_CLASSES,), dtype=jnp.float32)

    fwd = jax.jit(timm_model_forward)
    out = jax.block_until_ready(fwd(x, conv_w, conv_b, head_w, head_b))

    ref = _reference_forward(x, conv_w, conv_b, head_w, head_b)
    assert out.shape == (B, NUM_CLASSES)
    # bf16 conv operands (f32 accumulation) vs f32 reference -> loose tolerance.
    assert jnp.allclose(out, ref, atol=2e-2, rtol=2e-2), "mismatch vs reference"

    print("KERNEL_OK")
</pallas_src>

<mosaic_0001>
module attributes {stable_mosaic.version = 11 : i64} {
  func.func @fused_kernel(%arg0: i32, %arg1: i32, %arg2: memref<8x256x128xbf16, #tpu.memory_space<vmem>>, %arg3: memref<128x128xbf16, #tpu.memory_space<vmem>>, %arg4: memref<1x128xf32, #tpu.memory_space<vmem>>, %arg5: memref<128x128xf32, #tpu.memory_space<vmem>>, %arg6: memref<1x128xf32, #tpu.memory_space<vmem>>, %arg7: memref<8x128xf32, #tpu.memory_space<vmem>>, %arg8: memref<8x128xf32, #tpu.memory_space<vmem>>) attributes {dimension_semantics = [#tpu.dimension_semantics<parallel>, #tpu.dimension_semantics<arbitrary>], iteration_bounds = array<i64: 1, 1>, scalar_prefetch = 0 : i64, scratch_operands = 1 : i64, tpu.core_type = #tpu.core_type<tc>, window_params = [{transform_indices = @transform_0, window_bounds = array<i64: 8, 256, 128>}, {pipeline_mode = #tpu.pipeline_mode<synchronous>, transform_indices = @transform_1, window_bounds = array<i64: 128, 128>}, {pipeline_mode = #tpu.pipeline_mode<synchronous>, transform_indices = @transform_2, window_bounds = array<i64: 1, 128>}, {pipeline_mode = #tpu.pipeline_mode<synchronous>, transform_indices = @transform_3, window_bounds = array<i64: 128, 128>}, {pipeline_mode = #tpu.pipeline_mode<synchronous>, transform_indices = @transform_4, window_bounds = array<i64: 1, 128>}, {transform_indices = @transform_5, window_bounds = array<i64: 8, 128>}]} {
    %c0_i32 = arith.constant 0 : i32
    %0 = arith.cmpi eq, %arg1, %c0_i32 : i32
    %1 = arith.extui %0 : i1 to i32
    %c0_i32_0 = arith.constant 0 : i32
    %2 = arith.cmpi ne, %1, %c0_i32_0 : i32
    scf.if %2 {
      %cst_15 = arith.constant 0.000000e+00 : f32
      %20 = vector.broadcast %cst_15 : f32 to vector<8x128xf32>
      %c0_16 = arith.constant 0 : index
      %c0_17 = arith.constant 0 : index
      %21 = vector.load %arg8[%c0_16, %c0_17] : memref<8x128xf32, #tpu.memory_space<vmem>>, vector<8x128xf32>
      tpu.vector_store %arg8[%c0_16, %c0_17], %20 {strides = array<i32>} : memref<8x128xf32, #tpu.memory_space<vmem>>, vector<8x128xf32>,
    } else {
    }
    %c0 = arith.constant 0 : index
    %c0_1 = arith.constant 0 : index
    %c0_2 = arith.constant 0 : index
    %3 = vector.load %arg2[%c0, %c0_1, %c0_2] : memref<8x256x128xbf16, #tpu.memory_space<vmem>>, vector<8x256x128xbf16>
    %4 = vector.shape_cast %3 : vector<8x256x128xbf16> to vector<2048x128xbf16>
    %c0_3 = arith.constant 0 : index
    %c0_4 = arith.constant 0 : index
    %5 = vector.load %arg3[%c0_3, %c0_4] : memref<128x128xbf16, #tpu.memory_space<vmem>>, vector<128x128xbf16>
    %cst = arith.constant dense<0.000000e+00> : vector<2048x128xf32>
    %6 = tpu.matmul %4, %5, %cst {dimension_numbers = #tpu.dot_dimension_numbers<[1], [0], [0], [1], [0, 0, 1, 1], [], []>} : vector<2048x128xbf16>, vector<128x128xbf16>, vector<2048x128xf32> -> vector<2048x128xf32>
    %c0_5 = arith.constant 0 : index
    %c0_6 = arith.constant 0 : index
    %7 = vector.load %arg4[%c0_5, %c0_6] : memref<1x128xf32, #tpu.memory_space<vmem>>, vector<1x128xf32>
    %8 = vector.broadcast %7 : vector<1x128xf32> to vector<2048x128xf32>
    %9 = arith.addf %6, %8 : vector<2048x128xf32>
    %cst_7 = arith.constant 0.000000e+00 : f32
    %10 = vector.broadcast %cst_7 : f32 to vector<2048x128xf32>
    %11 = arith.maximumf %9, %10 : vector<2048x128xf32>
    %c0_8 = arith.constant 0 : index
    %c0_9 = arith.constant 0 : index
    %12 = vector.load %arg8[%c0_8, %c0_9] : memref<8x128xf32, #tpu.memory_space<vmem>>, vector<8x128xf32>
    %13 = vector.shape_cast %11 : vector<2048x128xf32> to vector<8x256x128xf32>
    %cst_10 = arith.constant dense<0.000000e+00> : vector<8x128xf32>
    %14 = vector.multi_reduction <add>, %13, %cst_10 [1] : vector<8x256x128xf32> to vector<8x128xf32>
    %15 = arith.addf %12, %14 : vector<8x128xf32>
    %c0_11 = arith.constant 0 : index
    %c0_12 = arith.constant 0 : index
    %16 = vector.load %arg8[%c0_11, %c0_12] : memref<8x128xf32, #tpu.memory_space<vmem>>, vector<8x128xf32>
    tpu.vector_store %arg8[%c0_11, %c0_12], %15 {strides = array<i32>} : memref<8x128xf32, #tpu.memory_space<vmem>>, vector<8x128xf32>,
    %c0_i32_13 = arith.constant 0 : i32
    %17 = arith.cmpi eq, %arg1, %c0_i32_13 : i32
    %18 = arith.extui %17 : i1 to i32
    %c0_i32_14 = arith.constant 0 : i32
    %19 = arith.cmpi ne, %18, %c0_i32_14 : i32
    scf.if %19 {
      %c0_15 = arith.constant 0 : index
      %c0_16 = arith.constant 0 : index
      %20 = vector.load %arg8[%c0_15, %c0_16] : memref<8x128xf32, #tpu.memory_space<vmem>>, vector<8x128xf32>
      %cst_17 = arith.constant 3.906250e-03 : f32
      %21 = vector.broadcast %cst_17 : f32 to vector<8x128xf32>
      %22 = arith.mulf %20, %21 : vector<8x128xf32>
      %c0_18 = arith.constant 0 : index
      %c0_19 = arith.constant 0 : index
      %23 = vector.load %arg5[%c0_18, %c0_19] : memref<128x128xf32, #tpu.memory_space<vmem>>, vector<128x128xf32>
      %cst_20 = arith.constant dense<0.000000e+00> : vector<8x128xf32>
      %24 = tpu.matmul %22, %23, %cst_20 {dimension_numbers = #tpu.dot_dimension_numbers<[1], [0], [0], [1], [0, 0, 1, 1], [], []>} : vector<8x128xf32>, vector<128x128xf32>, vector<8x128xf32> -> vector<8x128xf32>
      %c0_21 = arith.constant 0 : index
      %c0_22 = arith.constant 0 : index
      %25 = vector.load %arg6[%c0_21, %c0_22] : memref<1x128xf32, #tpu.memory_space<vmem>>, vector<1x128xf32>
      %26 = vector.broadcast %25 : vector<1x128xf32> to vector<8x128xf32>
      %27 = arith.addf %24, %26 : vector<8x128xf32>
      %c0_23 = arith.constant 0 : index
      %c0_24 = arith.constant 0 : index
      %28 = vector.load %arg7[%c0_23, %c0_24] : memref<8x128xf32, #tpu.memory_space<vmem>>, vector<8x128xf32>
      tpu.vector_store %arg7[%c0_23, %c0_24], %27 {strides = array<i32>} : memref<8x128xf32, #tpu.memory_space<vmem>>, vector<8x128xf32>,
    } else {
    }
    return
  }
  func.func @transform_0(%arg0: i32, %arg1: i32) -> (i32, i32, i32) {
    %c0_i32 = arith.constant 0 : i32
    %c0_i32_0 = arith.constant 0 : i32
    return %arg0, %arg1, %c0_i32 : i32, i32, i32
  }
  func.func @transform_1(%arg0: i32, %arg1: i32) -> (i32, i32) {
    %c0_i32 = arith.constant 0 : i32
    %c0_i32_0 = arith.constant 0 : i32
    %c0_i32_1 = arith.constant 0 : i32
    return %c0_i32, %c0_i32_0 : i32, i32
  }
  func.func @transform_2(%arg0: i32, %arg1: i32) -> (i32, i32) {
    %c0_i32 = arith.constant 0 : i32
    %c0_i32_0 = arith.constant 0 : i32
    %c0_i32_1 = arith.constant 0 : i32
    return %c0_i32, %c0_i32_0 : i32, i32
  }
  func.func @transform_3(%arg0: i32, %arg1: i32) -> (i32, i32) {
    %c0_i32 = arith.constant 0 : i32
    %c0_i32_0 = arith.constant 0 : i32
    %c0_i32_1 = arith.constant 0 : i32
    return %c0_i32, %c0_i32_0 : i32, i32
  }
  func.func @transform_4(%arg0: i32, %arg1: i32) -> (i32, i32) {
    %c0_i32 = arith.constant 0 : i32
    %c0_i32_0 = arith.constant 0 : i32
    %c0_i32_1 = arith.constant 0 : i32
    return %c0_i32, %c0_i32_0 : i32, i32
  }
  func.func @transform_5(%arg0: i32, %arg1: i32) -> (i32, i32) {
    %c0_i32 = arith.constant 0 : i32
    %c0_i32_0 = arith.constant 0 : i32
    return %arg0, %c0_i32 : i32, i32
  }
}

</mosaic_0001>

<llo_original>
// kernel: timm_model_forward.1
$region0: #{timm_model_forward.1}
  #allocation0 [shape = 'u32[]', space=smem, size = 0x4, offset = 0x4, fixed_abs, tag = 'smem constant byte address 0x4 - core index']
  #allocation1 [shape = 'u32[72,128]{1,0:T(1,128)}', space=vmem, size = 0x9000, scoped, tag = 'internal scratch']
  #allocation2 [shape = 'f32[8,128]{1,0:T(8,128)}', space=vmem, size = 0x1000, scoped, tag = 'scratch operand']
  %s0 = inlined_call_operand.vmem [shape: bf16[8,256,128], index: 0, kind: input, shape index: {}]
  %s1 = inlined_call_operand.vmem [shape: bf16[128,128], index: 1, kind: input, shape index: {}]
  %s2 = inlined_call_operand.vmem [shape: f32[1,128], index: 2, kind: input, shape index: {}]
  %s3 = inlined_call_operand.vmem [shape: f32[128,128], index: 3, kind: input, shape index: {}]
  %s4 = inlined_call_operand.vmem [shape: f32[1,128], index: 4, kind: input, shape index: {}]
  %s5 = inlined_call_operand.vmem [shape: f32[8,128], index: 5, kind: output, shape index: {}]
  %s6 = sld [smem:[#allocation0]]
  $region38: #{timm_model_forward.1} parent=0
    _
  %s8 = ssub.s32 1, %s6
  %s9 = scalar_select 0, %s8, %s6
  // Predicated region
  $region2: #{timm_model_forward.1} parent=0 // pred_check
    _
  $region3: #{timm_model_forward.1} parent=0 // pred_check_branch
    %11 = sbr.rel (0) target = $region5
  $region4: #{timm_model_forward.1} parent=0 // pred_region
    _
  $region5: #{timm_model_forward.1} parent=0 // pred_fallthru
    _
  // Predicated region
  $region6: #{timm_model_forward.1} parent=0 // pred_check
    _
  $region7: #{timm_model_forward.1} parent=0 // pred_check_branch
    %13 = sbr.rel (0) target = $region9
  $region8: #{timm_model_forward.1} parent=0 // pred_region
    _
  $region9: #{timm_model_forward.1} parent=0 // pred_fallthru
    _
  // Predicated region
  $region10: #{timm_model_forward.1} parent=0 // pred_check
    _
  $region11: #{timm_model_forward.1} parent=0 // pred_check_branch
    %15 = sbr.rel (0) target = $region13
  $region12: #{timm_model_forward.1} parent=0 // pred_region
    _
  $region13: #{timm_model_forward.1} parent=0 // pred_fallthru
    _
  // Predicated region
  $region14: #{timm_model_forward.1} parent=0 // pred_check
    _
  $region15: #{timm_model_forward.1} parent=0 // pred_check_branch
    %17 = sbr.rel (0) target = $region17
  $region16: #{timm_model_forward.1} parent=0 // pred_region
    _
  $region17: #{timm_model_forward.1} parent=0 // pred_fallthru
    _
  // Predicated region
  $region18: #{timm_model_forward.1} parent=0 // pred_check
    _
  $region19: #{timm_model_forward.1} parent=0 // pred_check_branch
    %19 = sbr.rel (0) target = $region21
  $region20: #{timm_model_forward.1} parent=0 // pred_region
    _
  $region21: #{timm_model_forward.1} parent=0 // pred_fallthru
    _
  %p20 = scmp.eq.s32.totalorder 0, 0
  // Predicated region
  $region22: #{timm_model_forward.1} parent=0 // pred_check
    %p21 = pneg %p20
  $region23: #{timm_model_forward.1} parent=0 // pred_check_branch
    %23 = sbr.rel (%p21) target = $region25
  $region24: #{timm_model_forward.1} parent=0 // pred_region
    %24 = vst [vmem:[#allocation2] sm:$0xff] 0.0
  $region25: #{timm_model_forward.1} parent=0 // pred_fallthru
    _
  %v25 = vld [vmem:[%s0] sm:$0xf]
  %v26 = vld [vmem:[%s0 + $0x4] sm:$0xf]
  %v27 = vld [vmem:[%s0 + $0x8] sm:$0xf]
  %v28 = vld [vmem:[%s0 + $0xc] sm:$0xf]
  %v29 = vld [vmem:[%s0 + $0x10] sm:$0xf]
  %v30 = vld [vmem:[%s0 + $0x14] sm:$0xf]
  %v31 = vld [vmem:[%s0 + $0x18] sm:$0xf]
  %v32 = vld [vmem:[%s0 + $0x1c] sm:$0xf]
  %v33 = vld [vmem:[%s0 + $0x20] sm:$0xf]
  %v34 = vld [vmem:[%s0 + $0x24] sm:$0xf]
  %v35 = vld [vmem:[%s0 + $0x28] sm:$0xf]
  %v36 = vld [vmem:[%s0 + $0x2c] sm:$0xf]
  %v37 = vld [vmem:[%s0 + $0x30] sm:$0xf]
  %v38 = vld [vmem:[%s0 + $0x34] sm:$0xf]
  %v39 = vld [vmem:[%s0 + $0x38] sm:$0xf]
  %v40 = vld [vmem:[%s0 + $0x3c] sm:$0xf]
  %v41 = vld [vmem:[%s0 + $0x40] sm:$0xf]
  %v42 = vld [vmem:[%s0 + $0x44] sm:$0xf]
  %v43 = vld [vmem:[%s0 + $0x48] sm:$0xf]
  %v44 = vld [vmem:[%s0 + $0x4c] sm:$0xf]
  %v45 = vld [vmem:[%s0 + $0x50] sm:$0xf]
  %v46 = vld [vmem:[%s0 + $0x54] sm:$0xf]
  %v47 = vld [vmem:[%s0 + $0x58] sm:$0xf]
  %v48 = vld [vmem:[%s0 + $0x5c] sm:$0xf]
  %v49 = vld [vmem:[%s0 + $0x60] sm:$0xf]
  %v50 = vld [vmem:[%s0 + $0x64] sm:$0xf]
  %v51 = vld [vmem:[%s0 + $0x68] sm:$0xf]
  %v52 = vld [vmem:[%s0 + $0x6c] sm:$0xf]
  %v53 = vld [vmem:[%s0 + $0x70] sm:$0xf]
  %v54 = vld [vmem:[%s0 + $0x74] sm:$0xf]
  %v55 = vld [vmem:[%s0 + $0x78] sm:$0xf]
  %v56 = vld [vmem:[%s0 + $0x7c] sm:$0xf]
  %v57 = vld [vmem:[%s0 + $0x80] sm:$0xf]
  %v58 = vld [vmem:[%s0 + $0x84] sm:$0xf]
  %v59 = vld [vmem:[%s0 + $0x88] sm:$0xf]
  %v60 = vld [vmem:[%s0 + $0x8c] sm:$0xf]
  %v61 = vld [vmem:[%s0 + $0x90] sm:$0xf]
  %v62 = vld [vmem:[%s0 + $0x94] sm:$0xf]
  %v63 = vld [vmem:[%s0 + $0x98] sm:$0xf]
  %v64 = vld [vmem:[%s0 + $0x9c] sm:$0xf]
  %v65 = vld [vmem:[%s0 + $0xa0] sm:$0xf]
  %v66 = vld [vmem:[%s0 + $0xa4] sm:$0xf]
  %v67 = vld [vmem:[%s0 + $0xa8] sm:$0xf]
  %v68 = vld [vmem:[%s0 + $0xac] sm:$0xf]
  %v69 = vld [vmem:[%s0 + $0xb0] sm:$0xf]
  %v70 = vld [vmem:[%s0 + $0xb4] sm:$0xf]
  %v71 = vld [vmem:[%s0 + $0xb8] sm:$0xf]
  %v72 = vld [vmem:[%s0 + $0xbc] sm:$0xf]
  %v73 = vld [vmem:[%s0 + $0xc0] sm:$0xf]
  %v74 = vld [vmem:[%s0 + $0xc4] sm:$0xf]
  %v75 = vld [vmem:[%s0 + $0xc8] sm:$0xf]
  %v76 = vld [vmem:[%s0 + $0xcc] sm:$0xf]
  %v77 = vld [vmem:[%s0 + $0xd0] sm:$0xf]
  %v78 = vld [vmem:[%s0 + $0xd4] sm:$0xf]
  %v79 = vld [vmem:[%s0 + $0xd8] sm:$0xf]
  %v80 = vld [vmem:[%s0 + $0xdc] sm:$0xf]
  %v81 = vld [vmem:[%s0 + $0xe0] sm:$0xf]
  %v82 = vld [vmem:[%s0 + $0xe4] sm:$0xf]
  %v83 = vld [vmem:[%s0 + $0xe8] sm:$0xf]
  %v84 = vld [vmem:[%s0 + $0xec] sm:$0xf]
  %v85 = vld [vmem:[%s0 + $0xf0] sm:$0xf]
  %v86 = vld [vmem:[%s0 + $0xf4] sm:$0xf]
  %v87 = vld [vmem:[%s0 + $0xf8] sm:$0xf]
  %v88 = vld [vmem:[%s0 + $0xfc] sm:$0xf]
  %v89 = vld [vmem:[%s0 + $0x100] sm:$0xf]
  %v90 = vld [vmem:[%s0 + $0x104] sm:$0xf]
  %v91 = vld [vmem:[%s0 + $0x108] sm:$0xf]
  %v92 = vld [vmem:[%s0 + $0x10c] sm:$0xf]
  %v93 = vld [vmem:[%s0 + $0x110] sm:$0xf]
  %v94 = vld [vmem:[%s0 + $0x114] sm:$0xf]
  %v95 = vld [vmem:[%s0 + $0x118] sm:$0xf]
  %v96 = vld [vmem:[%s0 + $0x11c] sm:$0xf]
  %v97 = vld [vmem:[%s0 + $0x120] sm:$0xf]
  %v98 = vld [vmem:[%s0 + $0x124] sm:$0xf]
  %v99 = vld [vmem:[%s0 + $0x128] sm:$0xf]
  %v100 = vld [vmem:[%s0 + $0x12c] sm:$0xf]
  %v101 = vld [vmem:[%s0 + $0x130] sm:$0xf]
  %v102 = vld [vmem:[%s0 + $0x134] sm:$0xf]
  %v103 = vld [vmem:[%s0 + $0x138] sm:$0xf]
  %v104 = vld [vmem:[%s0 + $0x13c] sm:$0xf]
  %v105 = vld [vmem:[%s0 + $0x140] sm:$0xf]
  %v106 = vld [vmem:[%s0 + $0x144] sm:$0xf]
  %v107 = vld [vmem:[%s0 + $0x148] sm:$0xf]
  %v108 = vld [vmem:[%s0 + $0x14c] sm:$0xf]
  %v109 = vld [vmem:[%s0 + $0x150] sm:$0xf]
  %v110 = vld [vmem:[%s0 + $0x154] sm:$0xf]
  %v111 = vld [vmem:[%s0 + $0x158] sm:$0xf]
  %v112 = vld [vmem:[%s0 + $0x15c] sm:$0xf]
  %v113 = vld [vmem:[%s0 + $0x160] sm:$0xf]
  %v114 = vld [vmem:[%s0 + $0x164] sm:$0xf]
  %v115 = vld [vmem:[%s0 + $0x168] sm:$0xf]
  %v116 = vld [vmem:[%s0 + $0x16c] sm:$0xf]
  %v117 = vld [vmem:[%s0 + $0x170] sm:$0xf]
  %v118 = vld [vmem:[%s0 + $0x174] sm:$0xf]
  %v119 = vld [vmem:[%s0 + $0x178] sm:$0xf]
  %v120 = vld [vmem:[%s0 + $0x17c] sm:$0xf]
  %v121 = vld [vmem:[%s0 + $0x180] sm:$0xf]
  %v122 = vld [vmem:[%s0 + $0x184] sm:$0xf]
  %v123 = vld [vmem:[%s0 + $0x188] sm:$0xf]
  %v124 = vld [vmem:[%s0 + $0x18c] sm:$0xf]
  %v125 = vld [vmem:[%s0 + $0x190] sm:$0xf]
  %v126 = vld [vmem:[%s0 + $0x194] sm:$0xf]
  %v127 = vld [vmem:[%s0 + $0x198] sm:$0xf]
  %v128 = vld [vmem:[%s0 + $0x19c] sm:$0xf]
  %v129 = vld [vmem:[%s0 + $0x1a0] sm:$0xf]
  %v130 = vld [vmem:[%s0 + $0x1a4] sm:$0xf]
  %v131 = vld [vmem:[%s0 + $0x1a8] sm:$0xf]
  %v132 = vld [vmem:[%s0 + $0x1ac] sm:$0xf]
  %v133 = vld [vmem:[%s0 + $0x1b0] sm:$0xf]
  %v134 = vld [vmem:[%s0 + $0x1b4] sm:$0xf]
  %v135 = vld [vmem:[%s0 + $0x1b8] sm:$0xf]
  %v136 = vld [vmem:[%s0 + $0x1bc] sm:$0xf]
  %v137 = vld [vmem:[%s0 + $0x1c0] sm:$0xf]
  %v138 = vld [vmem:[%s0 + $0x1c4] sm:$0xf]
  %v139 = vld [vmem:[%s0 + $0x1c8] sm:$0xf]
  %v140 = vld [vmem:[%s0 + $0x1cc] sm:$0xf]
  %v141 = vld [vmem:[%s0 + $0x1d0] sm:$0xf]
  %v142 = vld [vmem:[%s0 + $0x1d4] sm:$0xf]
  %v143 = vld [vmem:[%s0 + $0x1d8] sm:$0xf]
  %v144 = vld [vmem:[%s0 + $0x1dc] sm:$0xf]
  %v145 = vld [vmem:[%s0 + $0x1e0] sm:$0xf]
  %v146 = vld [vmem:[%s0 + $0x1e4] sm:$0xf]
  %v147 = vld [vmem:[%s0 + $0x1e8] sm:$0xf]
  %v148 = vld [vmem:[%s0 + $0x1ec] sm:$0xf]
  %v149 = vld [vmem:[%s0 + $0x1f0] sm:$0xf]
  %v150 = vld [vmem:[%s0 + $0x1f4] sm:$0xf]
  %v151 = vld [vmem:[%s0 + $0x1f8] sm:$0xf]
  %v152 = vld [vmem:[%s0 + $0x1fc] sm:$0xf]
  %v153 = vld [vmem:[%s0 + $0x200] sm:$0xf]
  %v154 = vld [vmem:[%s0 + $0x204] sm:$0xf]
  %v155 = vld [vmem:[%s0 + $0x208] sm:$0xf]
  %v156 = vld [vmem:[%s0 + $0x20c] sm:$0xf]
  %v157 = vld [vmem:[%s0 + $0x210] sm:$0xf]
  %v158 = vld [vmem:[%s0 + $0x214] sm:$0xf]
  %v159 = vld [vmem:[%s0 + $0x218] sm:$0xf]
  %v160 = vld [vmem:[%s0 + $0x21c] sm:$0xf]
  %v161 = vld [vmem:[%s0 + $0x220] sm:$0xf]
  %v162 = vld [vmem:[%s0 + $0x224] sm:$0xf]
  %v163 = vld [vmem:[%s0 + $0x228] sm:$0xf]
  %v164 = vld [vmem:[%s0 + $0x22c] sm:$0xf]
  %v165 = vld [vmem:[%s0 + $0x230] sm:$0xf]
  %v166 = vld [vmem:[%s0 + $0x234] sm:$0xf]
  %v167 = vld [vmem:[%s0 + $0x238] sm:$0xf]
  %v168 = vld [vmem:[%s0 + $0x23c] sm:$0xf]
  %v169 = vld [vmem:[%s0 + $0x240] sm:$0xf]
  %v170 = vld [vmem:[%s0 + $0x244] sm:$0xf]
  %v171 = vld [vmem:[%s0 + $0x248] sm:$0xf]
  %v172 = vld [vmem:[%s0 + $0x24c] sm:$0xf]
  %v173 = vld [vmem:[%s0 + $0x250] sm:$0xf]
  %v174 = vld [vmem:[%s0 + $0x254] sm:$0xf]
  %v175 = vld [vmem:[%s0 + $0x258] sm:$0xf]
  %v176 = vld [vmem:[%s0 + $0x25c] sm:$0xf]
  %v177 = vld [vmem:[%s0 + $0x260] sm:$0xf]
  %v178 = vld [vmem:[%s0 + $0x264] sm:$0xf]
  %v179 = vld [vmem:[%s0 + $0x268] sm:$0xf]
  %v180 = vld [vmem:[%s0 + $0x26c] sm:$0xf]
  %v181 = vld [vmem:[%s0 + $0x270] sm:$0xf]
  %v182 = vld [vmem:[%s0 + $0x274] sm:$0xf]
  %v183 = vld [vmem:[%s0 + $0x278] sm:$0xf]
  %v184 = vld [vmem:[%s0 + $0x27c] sm:$0xf]
  %v185 = vld [vmem:[%s0 + $0x280] sm:$0xf]
  %v186 = vld [vmem:[%s0 + $0x284] sm:$0xf]
  %v187 = vld [vmem:[%s0 + $0x288] sm:$0xf]
  %v188 = vld [vmem:[%s0 + $0x28c] sm:$0xf]
  %v189 = vld [vmem:[%s0 + $0x290] sm:$0xf]
  %v190 = vld [vmem:[%s0 + $0x294] sm:$0xf]
  %v191 = vld [vmem:[%s0 + $0x298] sm:$0xf]
  %v192 = vld [vmem:[%s0 + $0x29c] sm:$0xf]
  %v193 = vld [vmem:[%s0 + $0x2a0] sm:$0xf]
  %v194 = vld [vmem:[%s0 + $0x2a4] sm:$0xf]
  %v195 = vld [vmem:[%s0 + $0x2a8] sm:$0xf]
  %v196 = vld [vmem:[%s0 + $0x2ac] sm:$0xf]
  %v197 = vld [vmem:[%s0 + $0x2b0] sm:$0xf]
  %v198 = vld [vmem:[%s0 + $0x2b4] sm:$0xf]
  %v199 = vld [vmem:[%s0 + $0x2b8] sm:$0xf]
  %v200 = vld [vmem:[%s0 + $0x2bc] sm:$0xf]
  %v201 = vld [vmem:[%s0 + $0x2c0] sm:$0xf]
  %v202 = vld [vmem:[%s0 + $0x2c4] sm:$0xf]
  %v203 = vld [vmem:[%s0 + $0x2c8] sm:$0xf]
  %v204 = vld [vmem:[%s0 + $0x2cc] sm:$0xf]
  %v205 = vld [vmem:[%s0 + $0x2d0] sm:$0xf]
  %v206 = vld [vmem:[%s0 + $0x2d4] sm:$0xf]
  %v207 = vld [vmem:[%s0 + $0x2d8] sm:$0xf]
  %v208 = vld [vmem:[%s0 + $0x2dc] sm:$0xf]
  %v209 = vld [vmem:[%s0 + $0x2e0] sm:$0xf]
  %v210 = vld [vmem:[%s0 + $0x2e4] sm:$0xf]
  %v211 = vld [vmem:[%s0 + $0x2e8] sm:$0xf]
  %v212 = vld [vmem:[%s0 + $0x2ec] sm:$0xf]
  %v213 = vld [vmem:[%s0 + $0x2f0] sm:$0xf]
  %v214 = vld [vmem:[%s0 + $0x2f4] sm:$0xf]
  %v215 = vld [vmem:[%s0 + $0x2f8] sm:$0xf]
  %v216 = vld [vmem:[%s0 + $0x2fc] sm:$0xf]
  %v217 = vld [vmem:[%s0 + $0x300] sm:$0xf]
  %v218 = vld [vmem:[%s0 + $0x304] sm:$0xf]
  %v219 = vld [vmem:[%s0 + $0x308] sm:$0xf]
  %v220 = vld [vmem:[%s0 + $0x30c] sm:$0xf]
  %v221 = vld [vmem:[%s0 + $0x310] sm:$0xf]
  %v222 = vld [vmem:[%s0 + $0x314] sm:$0xf]
  %v223 = vld [vmem:[%s0 + $0x318] sm:$0xf]
  %v224 = vld [vmem:[%s0 + $0x31c] sm:$0xf]
  %v225 = vld [vmem:[%s0 + $0x320] sm:$0xf]
  %v226 = vld [vmem:[%s0 + $0x324] sm:$0xf]
  %v227 = vld [vmem:[%s0 + $0x328] sm:$0xf]
  %v228 = vld [vmem:[%s0 + $0x32c] sm:$0xf]
  %v229 = vld [vmem:[%s0 + $0x330] sm:$0xf]
  %v230 = vld [vmem:[%s0 + $0x334] sm:$0xf]
  %v231 = vld [vmem:[%s0 + $0x338] sm:$0xf]
  %v232 = vld [vmem:[%s0 + $0x33c] sm:$0xf]
  %v233 = vld [vmem:[%s0 + $0x340] sm:$0xf]
  %v234 = vld [vmem:[%s0 + $0x344] sm:$0xf]
  %v235 = vld [vmem:[%s0 + $0x348] sm:$0xf]
  %v236 = vld [vmem:[%s0 + $0x34c] sm:$0xf]
  %v237 = vld [vmem:[%s0 + $0x350] sm:$0xf]
  %v238 = vld [vmem:[%s0 + $0x354] sm:$0xf]
  %v239 = vld [vmem:[%s0 + $0x358] sm:$0xf]
  %v240 = vld [vmem:[%s0 + $0x35c] sm:$0xf]
  %v241 = vld [vmem:[%s0 + $0x360] sm:$0xf]
  %v242 = vld [vmem:[%s0 + $0x364] sm:$0xf]
  %v243 = vld [vmem:[%s0 + $0x368] sm:$0xf]
  %v244 = vld [vmem:[%s0 + $0x36c] sm:$0xf]
  %v245 = vld [vmem:[%s0 + $0x370] sm:$0xf]
  %v246 = vld [vmem:[%s0 + $0x374] sm:$0xf]
  %v247 = vld [vmem:[%s0 + $0x378] sm:$0xf]
  %v248 = vld [vmem:[%s0 + $0x37c] sm:$0xf]
  %v249 = vld [vmem:[%s0 + $0x380] sm:$0xf]
  %v250 = vld [vmem:[%s0 + $0x384] sm:$0xf]
  %v251 = vld [vmem:[%s0 + $0x388] sm:$0xf]
  %v252 = vld [vmem:[%s0 + $0x38c] sm:$0xf]
  %v253 = vld [vmem:[%s0 + $0x390] sm:$0xf]
  %v254 = vld [vmem:[%s0 + $0x394] sm:$0xf]
  %v255 = vld [vmem:[%s0 + $0x398] sm:$0xf]
  %v256 = vld [vmem:[%s0 + $0x39c] sm:$0xf]
  %v257 = vld [vmem:[%s0 + $0x3a0] sm:$0xf]
  %v258 = vld [vmem:[%s0 + $0x3a4] sm:$0xf]
  %v259 = vld [vmem:[%s0 + $0x3a8] sm:$0xf]
  %v260 = vld [vmem:[%s0 + $0x3ac] sm:$0xf]
  %v261 = vld [vmem:[%s0 + $0x3b0] sm:$0xf]
  %v262 = vld [vmem:[%s0 + $0x3b4] sm:$0xf]
  %v263 = vld [vmem:[%s0 + $0x3b8] sm:$0xf]
  %v264 = vld [vmem:[%s0 + $0x3bc] sm:$0xf]
  %v265 = vld [vmem:[%s0 + $0x3c0] sm:$0xf]
  %v266 = vld [vmem:[%s0 + $0x3c4] sm:$0xf]
  %v267 = vld [vmem:[%s0 + $0x3c8] sm:$0xf]
  %v268 = vld [vmem:[%s0 + $0x3cc] sm:$0xf]
  %v269 = vld [vmem:[%s0 + $0x3d0] sm:$0xf]
  %v270 = vld [vmem:[%s0 + $0x3d4] sm:$0xf]
  %v271 = vld [vmem:[%s0 + $0x3d8] sm:$0xf]
  %v272 = vld [vmem:[%s0 + $0x3dc] sm:$0xf]
  %v273 = vld [vmem:[%s0 + $0x3e0] sm:$0xf]
  %v274 = vld [vmem:[%s0 + $0x3e4] sm:$0xf]
  %v275 = vld [vmem:[%s0 + $0x3e8] sm:$0xf]
  %v276 = vld [vmem:[%s0 + $0x3ec] sm:$0xf]
  %v277 = vld [vmem:[%s0 + $0x3f0] sm:$0xf]
  %v278 = vld [vmem:[%s0 + $0x3f4] sm:$0xf]
  %v279 = vld [vmem:[%s0 + $0x3f8] sm:$0xf]
  %v280 = vld [vmem:[%s0 + $0x3fc] sm:$0xf]
  %v281 = vld [vmem:[%s1] sm:$0xf]
  %v282 = vld [vmem:[%s1 + $0x4] sm:$0xf]
  %v283 = vld [vmem:[%s1 + $0x8] sm:$0xf]
  %v284 = vld [vmem:[%s1 + $0xc] sm:$0xf]
  %v285 = vld [vmem:[%s1 + $0x10] sm:$0xf]
  %v286 = vld [vmem:[%s1 + $0x14] sm:$0xf]
  %v287 = vld [vmem:[%s1 + $0x18] sm:$0xf]
  %v288 = vld [vmem:[%s1 + $0x1c] sm:$0xf]
  %v289 = vld [vmem:[%s1 + $0x20] sm:$0xf]
  %v290 = vld [vmem:[%s1 + $0x24] sm:$0xf]
  %v291 = vld [vmem:[%s1 + $0x28] sm:$0xf]
  %v292 = vld [vmem:[%s1 + $0x2c] sm:$0xf]
  %v293 = vld [vmem:[%s1 + $0x30] sm:$0xf]
  %v294 = vld [vmem:[%s1 + $0x34] sm:$0xf]
  %v295 = vld [vmem:[%s1 + $0x38] sm:$0xf]
  %v296 = vld [vmem:[%s1 + $0x3c] sm:$0xf]
  %v297 = vld [vmem:[%s2] sm:$0x1]
  %v299 = vperm.slane %v297, 0
  %v557 = vunpack.c.l.b16 %v25
  %v558 = vunpack.c.l.b16 %v26
  %v559 = vunpack.c.l.b16 %v27
  %v560 = vunpack.c.l.b16 %v28
  %v561 = vunpack.c.l.b16 %v29
  %v562 = vunpack.c.l.b16 %v30
  %v563 = vunpack.c.l.b16 %v31
  %v564 = vunpack.c.l.b16 %v32
  %v565 = vunpack.c.l.b16 %v33
  %v566 = vunpack.c.l.b16 %v34
  %v567 = vunpack.c.l.b16 %v35
  %v568 = vunpack.c.l.b16 %v36
  %v569 = vunpack.c.l.b16 %v37
  %v570 = vunpack.c.l.b16 %v38
  %v571 = vunpack.c.l.b16 %v39
  %v572 = vunpack.c.l.b16 %v40
  %v573 = vunpack.c.l.b16 %v41
  %v574 = vunpack.c.l.b16 %v42
  %v575 = vunpack.c.l.b16 %v43
  %v576 = vunpack.c.l.b16 %v44
  %v577 = vunpack.c.l.b16 %v45
  %v578 = vunpack.c.l.b16 %v46
  %v579 = vunpack.c.l.b16 %v47
  %v580 = vunpack.c.l.b16 %v48
  %v581 = vunpack.c.l.b16 %v49
  %v582 = vunpack.c.l.b16 %v50
  %v583 = vunpack.c.l.b16 %v51
  %v584 = vunpack.c.l.b16 %v52
  %v585 = vunpack.c.l.b16 %v53
  %v586 = vunpack.c.l.b16 %v54
  %v587 = vunpack.c.l.b16 %v55
  %v588 = vunpack.c.l.b16 %v56
  %v589 = vunpack.c.l.b16 %v57
  %v590 = vunpack.c.l.b16 %v58
  %v591 = vunpack.c.l.b16 %v59
  %v592 = vunpack.c.l.b16 %v60
  %v593 = vunpack.c.l.b16 %v61
  %v594 = vunpack.c.l.b16 %v62
  %v595 = vunpack.c.l.b16 %v63
  %v596 = vunpack.c.l.b16 %v64
  %v597 = vunpack.c.l.b16 %v65
  %v598 = vunpack.c.l.b16 %v66
  %v599 = vunpack.c.l.b16 %v67
  %v600 = vunpack.c.l.b16 %v68
  %v601 = vunpack.c.l.b16 %v69
  %v602 = vunpack.c.l.b16 %v70
  %v603 = vunpack.c.l.b16 %v71
  %v604 = vunpack.c.l.b16 %v72
  %v605 = vunpack.c.l.b16 %v73
  %v606 = vunpack.c.l.b16 %v74
  %v607 = vunpack.c.l.b16 %v75
  %v608 = vunpack.c.l.b16 %v76
  %v609 = vunpack.c.l.b16 %v77
  %v610 = vunpack.c.l.b16 %v78
  %v611 = vunpack.c.l.b16 %v79
  %v612 = vunpack.c.l.b16 %v80
  %v613 = vunpack.c.l.b16 %v81
  %v614 = vunpack.c.l.b16 %v82
  %v615 = vunpack.c.l.b16 %v83
  %v616 = vunpack.c.l.b16 %v84
  %v617 = vunpack.c.l.b16 %v85
  %v618 = vunpack.c.l.b16 %v86
  %v619 = vunpack.c.l.b16 %v87
  %v620 = vunpack.c.l.b16 %v88
  %v621 = vunpack.c.l.b16 %v89
  %v622 = vunpack.c.l.b16 %v90
  %v623 = vunpack.c.l.b16 %v91
  %v624 = vunpack.c.l.b16 %v92
  %v625 = vunpack.c.l.b16 %v93
  %v626 = vunpack.c.l.b16 %v94
  %v627 = vunpack.c.l.b16 %v95
  %v628 = vunpack.c.l.b16 %v96
  %v629 = vunpack.c.l.b16 %v97
  %v630 = vunpack.c.l.b16 %v98
  %v631 = vunpack.c.l.b16 %v99
  %v632 = vunpack.c.l.b16 %v100
  %v633 = vunpack.c.l.b16 %v101
  %v634 = vunpack.c.l.b16 %v102
  %v635 = vunpack.c.l.b16 %v103
  %v636 = vunpack.c.l.b16 %v104
  %v637 = vunpack.c.l.b16 %v105
  %v638 = vunpack.c.l.b16 %v106
  %v639 = vunpack.c.l.b16 %v107
  %v640 = vunpack.c.l.b16 %v108
  %v641 = vunpack.c.l.b16 %v109
  %v642 = vunpack.c.l.b16 %v110
  %v643 = vunpack.c.l.b16 %v111
  %v644 = vunpack.c.l.b16 %v112
  %v645 = vunpack.c.l.b16 %v113
  %v646 = vunpack.c.l.b16 %v114
  %v647 = vunpack.c.l.b16 %v115
  %v648 = vunpack.c.l.b16 %v116
  %v649 = vunpack.c.l.b16 %v117
  %v650 = vunpack.c.l.b16 %v118
  %v651 = vunpack.c.l.b16 %v119
  %v652 = vunpack.c.l.b16 %v120
  %v653 = vunpack.c.l.b16 %v121
  %v654 = vunpack.c.l.b16 %v122
  %v655 = vunpack.c.l.b16 %v123
  %v656 = vunpack.c.l.b16 %v124
  %v657 = vunpack.c.l.b16 %v125
  %v658 = vunpack.c.l.b16 %v126
  %v659 = vunpack.c.l.b16 %v127
  %v660 = vunpack.c.l.b16 %v128
  %v661 = vunpack.c.l.b16 %v129
  %v662 = vunpack.c.l.b16 %v130
  %v663 = vunpack.c.l.b16 %v131
  %v664 = vunpack.c.l.b16 %v132
  %v665 = vunpack.c.l.b16 %v133
  %v666 = vunpack.c.l.b16 %v134
  %v667 = vunpack.c.l.b16 %v135
  %v668 = vunpack.c.l.b16 %v136
  %v669 = vunpack.c.l.b16 %v137
  %v670 = vunpack.c.l.b16 %v138
  %v671 = vunpack.c.l.b16 %v139
  %v672 = vunpack.c.l.b16 %v140
  %v673 = vunpack.c.l.b16 %v141
  %v674 = vunpack.c.l.b16 %v142
  %v675 = vunpack.c.l.b16 %v143
  %v676 = vunpack.c.l.b16 %v144
  %v677 = vunpack.c.l.b16 %v145
  %v678 = vunpack.c.l.b16 %v146
  %v679 = vunpack.c.l.b16 %v147
  %v680 = vunpack.c.l.b16 %v148
  %v681 = vunpack.c.l.b16 %v149
  %v682 = vunpack.c.l.b16 %v150
  %v683 = vunpack.c.l.b16 %v151
  %v684 = vunpack.c.l.b16 %v152
  %v685 = vunpack.c.l.b16 %v153
  %v686 = vunpack.c.l.b16 %v154
  %v687 = vunpack.c.l.b16 %v155
  %v688 = vunpack.c.l.b16 %v156
  %v689 = vunpack.c.l.b16 %v157
  %v690 = vunpack.c.l.b16 %v158
  %v691 = vunpack.c.l.b16 %v159
  %v692 = vunpack.c.l.b16 %v160
  %v693 = vunpack.c.l.b16 %v161
  %v694 = vunpack.c.l.b16 %v162
  %v695 = vunpack.c.l.b16 %v163
  %v696 = vunpack.c.l.b16 %v164
  %v697 = vunpack.c.l.b16 %v165
  %v698 = vunpack.c.l.b16 %v166
  %v699 = vunpack.c.l.b16 %v167
  %v700 = vunpack.c.l.b16 %v168
  %v701 = vunpack.c.l.b16 %v169
  %v702 = vunpack.c.l.b16 %v170
  %v703 = vunpack.c.l.b16 %v171
  %v704 = vunpack.c.l.b16 %v172
  %v705 = vunpack.c.l.b16 %v173
  %v706 = vunpack.c.l.b16 %v174
  %v707 = vunpack.c.l.b16 %v175
  %v708 = vunpack.c.l.b16 %v176
  %v709 = vunpack.c.l.b16 %v177
  %v710 = vunpack.c.l.b16 %v178
  %v711 = vunpack.c.l.b16 %v179
  %v712 = vunpack.c.l.b16 %v180
  %v713 = vunpack.c.l.b16 %v181
  %v714 = vunpack.c.l.b16 %v182
  %v715 = vunpack.c.l.b16 %v183
  %v716 = vunpack.c.l.b16 %v184
  %v717 = vunpack.c.l.b16 %v185
  %v718 = vunpack.c.l.b16 %v186
  %v719 = vunpack.c.l.b16 %v187
  %v720 = vunpack.c.l.b16 %v188
  %v721 = vunpack.c.l.b16 %v189
  %v722 = vunpack.c.l.b16 %v190
  %v723 = vunpack.c.l.b16 %v191
  %v724 = vunpack.c.l.b16 %v192
  %v725 = vunpack.c.l.b16 %v193
  %v726 = vunpack.c.l.b16 %v194
  %v727 = vunpack.c.l.b16 %v195
  %v728 = vunpack.c.l.b16 %v196
  %v729 = vunpack.c.l.b16 %v197
  %v730 = vunpack.c.l.b16 %v198
  %v731 = vunpack.c.l.b16 %v199
  %v732 = vunpack.c.l.b16 %v200
  %v733 = vunpack.c.l.b16 %v201
  %v734 = vunpack.c.l.b16 %v202
  %v735 = vunpack.c.l.b16 %v203
  %v736 = vunpack.c.l.b16 %v204
  %v737 = vunpack.c.l.b16 %v205
  %v738 = vunpack.c.l.b16 %v206
  %v739 = vunpack.c.l.b16 %v207
  %v740 = vunpack.c.l.b16 %v208
  %v741 = vunpack.c.l.b16 %v209
  %v742 = vunpack.c.l.b16 %v210
  %v743 = vunpack.c.l.b16 %v211
  %v744 = vunpack.c.l.b16 %v212
  %v745 = vunpack.c.l.b16 %v213
  %v746 = vunpack.c.l.b16 %v214
  %v747 = vunpack.c.l.b16 %v215
  %v748 = vunpack.c.l.b16 %v216
  %v749 = vunpack.c.l.b16 %v217
  %v750 = vunpack.c.l.b16 %v218
  %v751 = vunpack.c.l.b16 %v219
  %v752 = vunpack.c.l.b16 %v220
  %v753 = vunpack.c.l.b16 %v221
  %v754 = vunpack.c.l.b16 %v222
  %v755 = vunpack.c.l.b16 %v223
  %v756 = vunpack.c.l.b16 %v224
  %v757 = vunpack.c.l.b16 %v225
  %v758 = vunpack.c.l.b16 %v226
  %v759 = vunpack.c.l.b16 %v227
  %v760 = vunpack.c.l.b16 %v228
  %v761 = vunpack.c.l.b16 %v229
  %v762 = vunpack.c.l.b16 %v230
  %v763 = vunpack.c.l.b16 %v231
  %v764 = vunpack.c.l.b16 %v232
  %v765 = vunpack.c.l.b16 %v233
  %v766 = vunpack.c.l.b16 %v234
  %v767 = vunpack.c.l.b16 %v235
  %v768 = vunpack.c.l.b16 %v236
  %v769 = vunpack.c.l.b16 %v237
  %v770 = vunpack.c.l.b16 %v238
  %v771 = vunpack.c.l.b16 %v239
  %v772 = vunpack.c.l.b16 %v240
  %v773 = vunpack.c.l.b16 %v241
  %v774 = vunpack.c.l.b16 %v242
  %v775 = vunpack.c.l.b16 %v243
  %v776 = vunpack.c.l.b16 %v244
  %v777 = vunpack.c.l.b16 %v245
  %v778 = vunpack.c.l.b16 %v246
  %v779 = vunpack.c.l.b16 %v247
  %v780 = vunpack.c.l.b16 %v248
  %v781 = vunpack.c.l.b16 %v249
  %v782 = vunpack.c.l.b16 %v250
  %v783 = vunpack.c.l.b16 %v251
  %v784 = vunpack.c.l.b16 %v252
  %v785 = vunpack.c.l.b16 %v253
  %v786 = vunpack.c.l.b16 %v254
  %v787 = vunpack.c.l.b16 %v255
  %v788 = vunpack.c.l.b16 %v256
  %v789 = vunpack.c.l.b16 %v257
  %v790 = vunpack.c.l.b16 %v258
  %v791 = vunpack.c.l.b16 %v259
  %v792 = vunpack.c.l.b16 %v260
  %v793 = vunpack.c.l.b16 %v261
  %v794 = vunpack.c.l.b16 %v262
  %v795 = vunpack.c.l.b16 %v263
  %v796 = vunpack.c.l.b16 %v264
  %v797 = vunpack.c.l.b16 %v265
  %v798 = vunpack.c.l.b16 %v266
  %v799 = vunpack.c.l.b16 %v267
  %v800 = vunpack.c.l.b16 %v268
  %v801 = vunpack.c.l.b16 %v269
  %v802 = vunpack.c.l.b16 %v270
  %v803 = vunpack.c.l.b16 %v271
  %v804 = vunpack.c.l.b16 %v272
  %v805 = vunpack.c.l.b16 %v273
  %v806 = vunpack.c.l.b16 %v274
  %v807 = vunpack.c.l.b16 %v275
  %v808 = vunpack.c.l.b16 %v276
  %v809 = vunpack.c.l.b16 %v277
  %v810 = vunpack.c.l.b16 %v278
  %v811 = vunpack.c.l.b16 %v279
  %v812 = vunpack.c.l.b16 %v280
  %v813 = vpack.c.b16 %v558, %v557
  %v814 = vpack.c.b16 %v560, %v559
  %v815 = vpack.c.b16 %v562, %v561
  %v816 = vpack.c.b16 %v564, %v563
  %v817 = vpack.c.b16 %v566, %v565
  %v818 = vpack.c.b16 %v568, %v567
  %v819 = vpack.c.b16 %v570, %v569
  %v820 = vpack.c.b16 %v572, %v571
  %v821 = vpack.c.b16 %v574, %v573
  %v822 = vpack.c.b16 %v576, %v575
  %v823 = vpack.c.b16 %v578, %v577
  %v824 = vpack.c.b16 %v580, %v579
  %v825 = vpack.c.b16 %v582, %v581
  %v826 = vpack.c.b16 %v584, %v583
  %v827 = vpack.c.b16 %v586, %v585
  %v828 = vpack.c.b16 %v588, %v587
  %v829 = vpack.c.b16 %v590, %v589
  %v830 = vpack.c.b16 %v592, %v591
  %v831 = vpack.c.b16 %v594, %v593
  %v832 = vpack.c.b16 %v596, %v595
  %v833 = vpack.c.b16 %v598, %v597
  %v834 = vpack.c.b16 %v600, %v599
  %v835 = vpack.c.b16 %v602, %v601
  %v836 = vpack.c.b16 %v604, %v603
  %v837 = vpack.c.b16 %v606, %v605
  %v838 = vpack.c.b16 %v608, %v607
  %v839 = vpack.c.b16 %v610, %v609
  %v840 = vpack.c.b16 %v612, %v611
  %v841 = vpack.c.b16 %v614, %v613
  %v842 = vpack.c.b16 %v616, %v615
  %v843 = vpack.c.b16 %v618, %v617
  %v844 = vpack.c.b16 %v620, %v619
  %v845 = vpack.c.b16 %v622, %v621
  %v846 = vpack.c.b16 %v624, %v623
  %v847 = vpack.c.b16 %v626, %v625
  %v848 = vpack.c.b16 %v628, %v627
  %v849 = vpack.c.b16 %v630, %v629
  %v850 = vpack.c.b16 %v632, %v631
  %v851 = vpack.c.b16 %v634, %v633
  %v852 = vpack.c.b16 %v636, %v635
  %v853 = vpack.c.b16 %v638, %v637
  %v854 = vpack.c.b16 %v640, %v639
  %v855 = vpack.c.b16 %v642, %v641
  %v856 = vpack.c.b16 %v644, %v643
  %v857 = vpack.c.b16 %v646, %v645
  %v858 = vpack.c.b16 %v648, %v647
  %v859 = vpack.c.b16 %v650, %v649
  %v860 = vpack.c.b16 %v652, %v651
  %v861 = vpack.c.b16 %v654, %v653
  %v862 = vpack.c.b16 %v656, %v655
  %v863 = vpack.c.b16 %v658, %v657
  %v864 = vpack.c.b16 %v660, %v659
  %v865 = vpack.c.b16 %v662, %v661
  %v866 = vpack.c.b16 %v664, %v663
  %v867 = vpack.c.b16 %v666, %v665
  %v868 = vpack.c.b16 %v668, %v667
  %v869 = vpack.c.b16 %v670, %v669
  %v870 = vpack.c.b16 %v672, %v671
  %v871 = vpack.c.b16 %v674, %v673
  %v872 = vpack.c.b16 %v676, %v675
  %v873 = vpack.c.b16 %v678, %v677
  %v874 = vpack.c.b16 %v680, %v679
  %v875 = vpack.c.b16 %v682, %v681
  %v876 = vpack.c.b16 %v684, %v683
  %v877 = vpack.c.b16 %v686, %v685
  %v878 = vpack.c.b16 %v688, %v687
  %v879 = vpack.c.b16 %v690, %v689
  %v880 = vpack.c.b16 %v692, %v691
  %v881 = vpack.c.b16 %v694, %v693
  %v882 = vpack.c.b16 %v696, %v695
  %v883 = vpack.c.b16 %v698, %v697
  %v884 = vpack.c.b16 %v700, %v699
  %v885 = vpack.c.b16 %v702, %v701
  %v886 = vpack.c.b16 %v704, %v703
  %v887 = vpack.c.b16 %v706, %v705
  %v888 = vpack.c.b16 %v708, %v707
  %v889 = vpack.c.b16 %v710, %v709
  %v890 = vpack.c.b16 %v712, %v711
  %v891 = vpack.c.b16 %v714, %v713
  %v892 = vpack.c.b16 %v716, %v715
  %v893 = vpack.c.b16 %v718, %v717
  %v894 = vpack.c.b16 %v720, %v719
  %v895 = vpack.c.b16 %v722, %v721
  %v896 = vpack.c.b16 %v724, %v723
  %v897 = vpack.c.b16 %v726, %v725
  %v898 = vpack.c.b16 %v728, %v727
  %v899 = vpack.c.b16 %v730, %v729
  %v900 = vpack.c.b16 %v732, %v731
  %v901 = vpack.c.b16 %v734, %v733
  %v902 = vpack.c.b16 %v736, %v735
  %v903 = vpack.c.b16 %v738, %v737
  %v904 = vpack.c.b16 %v740, %v739
  %v905 = vpack.c.b16 %v742, %v741
  %v906 = vpack.c.b16 %v744, %v743
  %v907 = vpack.c.b16 %v746, %v745
  %v908 = vpack.c.b16 %v748, %v747
  %v909 = vpack.c.b16 %v750, %v749
  %v910 = vpack.c.b16 %v752, %v751
  %v911 = vpack.c.b16 %v754, %v753
  %v912 = vpack.c.b16 %v756, %v755
  %v913 = vpack.c.b16 %v758, %v757
  %v914 = vpack.c.b16 %v760, %v759
  %v915 = vpack.c.b16 %v762, %v761
  %v916 = vpack.c.b16 %v764, %v763
  %v917 = vpack.c.b16 %v766, %v765
  %v918 = vpack.c.b16 %v768, %v767
  %v919 = vpack.c.b16 %v770, %v769
  %v920 = vpack.c.b16 %v772, %v771
  %v921 = vpack.c.b16 %v774, %v773
  %v922 = vpack.c.b16 %v776, %v775
  %v923 = vpack.c.b16 %v778, %v777
  %v924 = vpack.c.b16 %v780, %v779
  %v925 = vpack.c.b16 %v782, %v781
  %v926 = vpack.c.b16 %v784, %v783
  %v927 = vpack.c.b16 %v786, %v785
  %v928 = vpack.c.b16 %v788, %v787
  %v929 = vpack.c.b16 %v790, %v789
  %v930 = vpack.c.b16 %v792, %v791
  %v931 = vpack.c.b16 %v794, %v793
  %v932 = vpack.c.b16 %v796, %v795
  %v933 = vpack.c.b16 %v798, %v797
  %v934 = vpack.c.b16 %v800, %v799
  %v935 = vpack.c.b16 %v802, %v801
  %v936 = vpack.c.b16 %v804, %v803
  %v937 = vpack.c.b16 %v806, %v805
  %v938 = vpack.c.b16 %v808, %v807
  %v939 = vpack.c.b16 %v810, %v809
  %v940 = vpack.c.b16 %v812, %v811
  %v1085 = vunpack.c.l.b16 %v281
  %v1086 = vunpack.c.l.b16 %v282
  %v1087 = vunpack.c.l.b16 %v283
  %v1088 = vunpack.c.l.b16 %v284
  %v1089 = vunpack.c.l.b16 %v285
  %v1090 = vunpack.c.l.b16 %v286
  %v1091 = vunpack.c.l.b16 %v287
  %v1092 = vunpack.c.l.b16 %v288
  %v1093 = vunpack.c.l.b16 %v289
  %v1094 = vunpack.c.l.b16 %v290
  %v1095 = vunpack.c.l.b16 %v291
  %v1096 = vunpack.c.l.b16 %v292
  %v1097 = vunpack.c.l.b16 %v293
  %v1098 = vunpack.c.l.b16 %v294
  %v1099 = vunpack.c.l.b16 %v295
  %v1100 = vunpack.c.l.b16 %v296
  %v1101 = vpack.c.b16 %v1086, %v1085
  %v1102 = vpack.c.b16 %v1088, %v1087
  %v1103 = vpack.c.b16 %v1090, %v1089
  %v1104 = vpack.c.b16 %v1092, %v1091
  %v1105 = vpack.c.b16 %v1094, %v1093
  %v1106 = vpack.c.b16 %v1096, %v1095
  %v1107 = vpack.c.b16 %v1098, %v1097
  %v1108 = vpack.c.b16 %v1100, %v1099
  %1117 = vmatpush.bf16.msra.mxu0 %v1108
  %1118 = vmatpush.bf16.msra.mxu0 %v1107
  %1119 = vmatpush.bf16.msra.mxu0 %v1106
  %1120 = vmatpush.bf16.msra.mxu0 %v1105
  %1121 = vmatpush.bf16.msra.mxu0 %v1104
  %1122 = vmatpush.bf16.msra.mxu0 %v1103
  %1123 = vmatpush.bf16.msra.mxu0 %v1102
  %1124 = vmatpush.bf16.msra.mxu0 %v1101
  %1125 = vmatmul.bf16.gmra.mxu0 %v813
  %v1126 = vpop.f32.mrf.mxu0
  %v1127 = vadd.f32 %v299, %v1126
  %v1128 = vpop.f32.mrf.mxu0
  %v1129 = vadd.f32 %v299, %v1128
  %1130 = vmatmul.bf16.gmra.mxu0 %v814
  %v1131 = vpop.f32.mrf.mxu0
  %v1132 = vadd.f32 %v299, %v1131
  %v1133 = vpop.f32.mrf.mxu0
  %v1134 = vadd.f32 %v299, %v1133
  %1135 = vmatmul.bf16.gmra.mxu0 %v815
  %v1136 = vpop.f32.mrf.mxu0
  %v1137 = vadd.f32 %v299, %v1136
  %v1138 = vpop.f32.mrf.mxu0
  %v1139 = vadd.f32 %v299, %v1138
  %1140 = vmatmul.bf16.gmra.mxu0 %v816
  %v1141 = vpop.f32.mrf.mxu0
  %v1142 = vadd.f32 %v299, %v1141
  %v1143 = vpop.f32.mrf.mxu0
  %v1144 = vadd.f32 %v299, %v1143
  %1145 = vmatmul.bf16.gmra.mxu0 %v817
  %v1146 = vpop.f32.mrf.mxu0
  %v1147 = vadd.f32 %v299, %v1146
  %v1148 = vpop.f32.mrf.mxu0
  %v1149 = vadd.f32 %v299, %v1148
  %1150 = vmatmul.bf16.gmra.mxu0 %v818
  %v1151 = vpop.f32.mrf.mxu0
  %v1152 = vadd.f32 %v299, %v1151
  %v1153 = vpop.f32.mrf.mxu0
  %v1154 = vadd.f32 %v299, %v1153
  %1155 = vmatmul.bf16.gmra.mxu0 %v819
  %v1156 = vpop.f32.mrf.mxu0
  %v1157 = vadd.f32 %v299, %v1156
  %v1158 = vpop.f32.mrf.mxu0
  %v1159 = vadd.f32 %v299, %v1158
  %1160 = vmatmul.bf16.gmra.mxu0 %v820
  %v1161 = vpop.f32.mrf.mxu0
  %v1162 = vadd.f32 %v299, %v1161
  %v1163 = vpop.f32.mrf.mxu0
  %v1164 = vadd.f32 %v299, %v1163
  %1165 = vmatmul.bf16.gmra.mxu0 %v821
  %v1166 = vpop.f32.mrf.mxu0
  %v1167 = vadd.f32 %v299, %v1166
  %v1168 = vpop.f32.mrf.mxu0
  %v1169 = vadd.f32 %v299, %v1168
  %1170 = vmatmul.bf16.gmra.mxu0 %v822
  %v1171 = vpop.f32.mrf.mxu0
  %v1172 = vadd.f32 %v299, %v1171
  %v1173 = vpop.f32.mrf.mxu0
  %v1174 = vadd.f32 %v299, %v1173
  %1175 = vmatmul.bf16.gmra.mxu0 %v823
  %v1176 = vpop.f32.mrf.mxu0
  %v1177 = vadd.f32 %v299, %v1176
  %v1178 = vpop.f32.mrf.mxu0
  %v1179 = vadd.f32 %v299, %v1178
  %1180 = vmatmul.bf16.gmra.mxu0 %v824
  %v1181 = vpop.f32.mrf.mxu0
  %v1182 = vadd.f32 %v299, %v1181
  %v1183 = vpop.f32.mrf.mxu0
  %v1184 = vadd.f32 %v299, %v1183
  %1185 = vmatmul.bf16.gmra.mxu0 %v825
  %v1186 = vpop.f32.mrf.mxu0
  %v1187 = vadd.f32 %v299, %v1186
  %v1188 = vpop.f32.mrf.mxu0
  %v1189 = vadd.f32 %v299, %v1188
  %1190 = vmatmul.bf16.gmra.mxu0 %v826
  %v1191 = vpop.f32.mrf.mxu0
  %v1192 = vadd.f32 %v299, %v1191
  %v1193 = vpop.f32.mrf.mxu0
  %v1194 = vadd.f32 %v299, %v1193
  %1195 = vmatmul.bf16.gmra.mxu0 %v827
  %v1196 = vpop.f32.mrf.mxu0
  %v1197 = vadd.f32 %v299, %v1196
  %v1198 = vpop.f32.mrf.mxu0
  %v1199 = vadd.f32 %v299, %v1198
  %1200 = vmatmul.bf16.gmra.mxu0 %v828
  %v1201 = vpop.f32.mrf.mxu0
  %v1202 = vadd.f32 %v299, %v1201
  %v1203 = vpop.f32.mrf.mxu0
  %v1204 = vadd.f32 %v299, %v1203
  %1205 = vmatmul.bf16.gmra.mxu0 %v829
  %v1206 = vpop.f32.mrf.mxu0
  %v1207 = vadd.f32 %v299, %v1206
  %v1208 = vpop.f32.mrf.mxu0
  %v1209 = vadd.f32 %v299, %v1208
  %1210 = vmatmul.bf16.gmra.mxu0 %v830
  %v1211 = vpop.f32.mrf.mxu0
  %v1212 = vadd.f32 %v299, %v1211
  %v1213 = vpop.f32.mrf.mxu0
  %v1214 = vadd.f32 %v299, %v1213
  %1215 = vmatmul.bf16.gmra.mxu0 %v831
  %v1216 = vpop.f32.mrf.mxu0
  %v1217 = vadd.f32 %v299, %v1216
  %v1218 = vpop.f32.mrf.mxu0
  %v1219 = vadd.f32 %v299, %v1218
  %1220 = vmatmul.bf16.gmra.mxu0 %v832
  %v1221 = vpop.f32.mrf.mxu0
  %v1222 = vadd.f32 %v299, %v1221
  %v1223 = vpop.f32.mrf.mxu0
  %v1224 = vadd.f32 %v299, %v1223
  %1225 = vmatmul.bf16.gmra.mxu0 %v833
  %v1226 = vpop.f32.mrf.mxu0
  %v1227 = vadd.f32 %v299, %v1226
  %v1228 = vpop.f32.mrf.mxu0
  %v1229 = vadd.f32 %v299, %v1228
  %1230 = vmatmul.bf16.gmra.mxu0 %v834
  %v1231 = vpop.f32.mrf.mxu0
  %v1232 = vadd.f32 %v299, %v1231
  %v1233 = vpop.f32.mrf.mxu0
  %v1234 = vadd.f32 %v299, %v1233
  %1235 = vmatmul.bf16.gmra.mxu0 %v835
  %v1236 = vpop.f32.mrf.mxu0
  %v1237 = vadd.f32 %v299, %v1236
  %v1238 = vpop.f32.mrf.mxu0
  %v1239 = vadd.f32 %v299, %v1238
  %1240 = vmatmul.bf16.gmra.mxu0 %v836
  %v1241 = vpop.f32.mrf.mxu0
  %v1242 = vadd.f32 %v299, %v1241
  %v1243 = vpop.f32.mrf.mxu0
  %v1244 = vadd.f32 %v299, %v1243
  %1245 = vmatmul.bf16.gmra.mxu0 %v837
  %v1246 = vpop.f32.mrf.mxu0
  %v1247 = vadd.f32 %v299, %v1246
  %v1248 = vpop.f32.mrf.mxu0
  %v1249 = vadd.f32 %v299, %v1248
  %1250 = vmatmul.bf16.gmra.mxu0 %v838
  %v1251 = vpop.f32.mrf.mxu0
  %v1252 = vadd.f32 %v299, %v1251
  %v1253 = vpop.f32.mrf.mxu0
  %v1254 = vadd.f32 %v299, %v1253
  %1255 = vmatmul.bf16.gmra.mxu0 %v839
  %v1256 = vpop.f32.mrf.mxu0
  %v1257 = vadd.f32 %v299, %v1256
  %v1258 = vpop.f32.mrf.mxu0
  %v1259 = vadd.f32 %v299, %v1258
  %1260 = vmatmul.bf16.gmra.mxu0 %v840
  %v1261 = vpop.f32.mrf.mxu0
  %v1262 = vadd.f32 %v299, %v1261
  %v1263 = vpop.f32.mrf.mxu0
  %v1264 = vadd.f32 %v299, %v1263
  %1265 = vmatmul.bf16.gmra.mxu0 %v841
  %v1266 = vpop.f32.mrf.mxu0
  %v1267 = vadd.f32 %v299, %v1266
  %v1268 = vpop.f32.mrf.mxu0
  %v1269 = vadd.f32 %v299, %v1268
  %1270 = vmatmul.bf16.gmra.mxu0 %v842
  %v1271 = vpop.f32.mrf.mxu0
  %v1272 = vadd.f32 %v299, %v1271
  %v1273 = vpop.f32.mrf.mxu0
  %v1274 = vadd.f32 %v299, %v1273
  %1275 = vmatmul.bf16.gmra.mxu0 %v843
  %v1276 = vpop.f32.mrf.mxu0
  %v1277 = vadd.f32 %v299, %v1276
  %v1278 = vpop.f32.mrf.mxu0
  %v1279 = vadd.f32 %v299, %v1278
  %1280 = vmatmul.bf16.gmra.mxu0 %v844
  %v1281 = vpop.f32.mrf.mxu0
  %v1282 = vadd.f32 %v299, %v1281
  %v1283 = vpop.f32.mrf.mxu0
  %v1284 = vadd.f32 %v299, %v1283
  %1285 = vmatmul.bf16.gmra.mxu0 %v845
  %v1286 = vpop.f32.mrf.mxu0
  %v1287 = vadd.f32 %v299, %v1286
  %v1288 = vpop.f32.mrf.mxu0
  %v1289 = vadd.f32 %v299, %v1288
  %1290 = vmatmul.bf16.gmra.mxu0 %v846
  %v1291 = vpop.f32.mrf.mxu0
  %v1292 = vadd.f32 %v299, %v1291
  %v1293 = vpop.f32.mrf.mxu0
  %v1294 = vadd.f32 %v299, %v1293
  %1295 = vmatmul.bf16.gmra.mxu0 %v847
  %v1296 = vpop.f32.mrf.mxu0
  %v1297 = vadd.f32 %v299, %v1296
  %v1298 = vpop.f32.mrf.mxu0
  %v1299 = vadd.f32 %v299, %v1298
  %1300 = vmatmul.bf16.gmra.mxu0 %v848
  %v1301 = vpop.f32.mrf.mxu0
  %v1302 = vadd.f32 %v299, %v1301
  %v1303 = vpop.f32.mrf.mxu0
  %v1304 = vadd.f32 %v299, %v1303
  %1305 = vmatmul.bf16.gmra.mxu0 %v849
  %v1306 = vpop.f32.mrf.mxu0
  %v1307 = vadd.f32 %v299, %v1306
  %v1308 = vpop.f32.mrf.mxu0
  %v1309 = vadd.f32 %v299, %v1308
  %1310 = vmatmul.bf16.gmra.mxu0 %v850
  %v1311 = vpop.f32.mrf.mxu0
  %v1312 = vadd.f32 %v299, %v1311
  %v1313 = vpop.f32.mrf.mxu0
  %v1314 = vadd.f32 %v299, %v1313
  %1315 = vmatmul.bf16.gmra.mxu0 %v851
  %v1316 = vpop.f32.mrf.mxu0
  %v1317 = vadd.f32 %v299, %v1316
  %v1318 = vpop.f32.mrf.mxu0
  %v1319 = vadd.f32 %v299, %v1318
  %1320 = vmatmul.bf16.gmra.mxu0 %v852
  %v1321 = vpop.f32.mrf.mxu0
  %v1322 = vadd.f32 %v299, %v1321
  %v1323 = vpop.f32.mrf.mxu0
  %v1324 = vadd.f32 %v299, %v1323
  %1325 = vmatmul.bf16.gmra.mxu0 %v853
  %v1326 = vpop.f32.mrf.mxu0
  %v1327 = vadd.f32 %v299, %v1326
  %v1328 = vpop.f32.mrf.mxu0
  %v1329 = vadd.f32 %v299, %v1328
  %1330 = vmatmul.bf16.gmra.mxu0 %v854
  %v1331 = vpop.f32.mrf.mxu0
  %v1332 = vadd.f32 %v299, %v1331
  %v1333 = vpop.f32.mrf.mxu0
  %v1334 = vadd.f32 %v299, %v1333
  %1335 = vmatmul.bf16.gmra.mxu0 %v855
  %v1336 = vpop.f32.mrf.mxu0
  %v1337 = vadd.f32 %v299, %v1336
  %v1338 = vpop.f32.mrf.mxu0
  %v1339 = vadd.f32 %v299, %v1338
  %1340 = vmatmul.bf16.gmra.mxu0 %v856
  %v1341 = vpop.f32.mrf.mxu0
  %v1342 = vadd.f32 %v299, %v1341
  %v1343 = vpop.f32.mrf.mxu0
  %v1344 = vadd.f32 %v299, %v1343
  %1345 = vmatmul.bf16.gmra.mxu0 %v857
  %v1346 = vpop.f32.mrf.mxu0
  %v1347 = vadd.f32 %v299, %v1346
  %v1348 = vpop.f32.mrf.mxu0
  %v1349 = vadd.f32 %v299, %v1348
  %1350 = vmatmul.bf16.gmra.mxu0 %v858
  %v1351 = vpop.f32.mrf.mxu0
  %v1352 = vadd.f32 %v299, %v1351
  %v1353 = vpop.f32.mrf.mxu0
  %v1354 = vadd.f32 %v299, %v1353
  %1355 = vmatmul.bf16.gmra.mxu0 %v859
  %v1356 = vpop.f32.mrf.mxu0
  %v1357 = vadd.f32 %v299, %v1356
  %v1358 = vpop.f32.mrf.mxu0
  %v1359 = vadd.f32 %v299, %v1358
  %1360 = vmatmul.bf16.gmra.mxu0 %v860
  %v1361 = vpop.f32.mrf.mxu0
  %v1362 = vadd.f32 %v299, %v1361
  %v1363 = vpop.f32.mrf.mxu0
  %v1364 = vadd.f32 %v299, %v1363
  %1365 = vmatmul.bf16.gmra.mxu0 %v861
  %v1366 = vpop.f32.mrf.mxu0
  %v1367 = vadd.f32 %v299, %v1366
  %v1368 = vpop.f32.mrf.mxu0
  %v1369 = vadd.f32 %v299, %v1368
  %1370 = vmatmul.bf16.gmra.mxu0 %v862
  %v1371 = vpop.f32.mrf.mxu0
  %v1372 = vadd.f32 %v299, %v1371
  %v1373 = vpop.f32.mrf.mxu0
  %v1374 = vadd.f32 %v299, %v1373
  %1375 = vmatmul.bf16.gmra.mxu0 %v863
  %v1376 = vpop.f32.mrf.mxu0
  %v1377 = vadd.f32 %v299, %v1376
  %v1378 = vpop.f32.mrf.mxu0
  %v1379 = vadd.f32 %v299, %v1378
  %1380 = vmatmul.bf16.gmra.mxu0 %v864
  %v1381 = vpop.f32.mrf.mxu0
  %v1382 = vadd.f32 %v299, %v1381
  %v1383 = vpop.f32.mrf.mxu0
  %v1384 = vadd.f32 %v299, %v1383
  %1385 = vmatmul.bf16.gmra.mxu0 %v865
  %v1386 = vpop.f32.mrf.mxu0
  %v1387 = vadd.f32 %v299, %v1386
  %v1388 = vpop.f32.mrf.mxu0
  %v1389 = vadd.f32 %v299, %v1388
  %1390 = vmatmul.bf16.gmra.mxu0 %v866
  %v1391 = vpop.f32.mrf.mxu0
  %v1392 = vadd.f32 %v299, %v1391
  %v1393 = vpop.f32.mrf.mxu0
  %v1394 = vadd.f32 %v299, %v1393
  %1395 = vmatmul.bf16.gmra.mxu0 %v867
  %v1396 = vpop.f32.mrf.mxu0
  %v1397 = vadd.f32 %v299, %v1396
  %v1398 = vpop.f32.mrf.mxu0
  %v1399 = vadd.f32 %v299, %v1398
  %1400 = vmatmul.bf16.gmra.mxu0 %v868
  %v1401 = vpop.f32.mrf.mxu0
  %v1402 = vadd.f32 %v299, %v1401
  %v1403 = vpop.f32.mrf.mxu0
  %v1404 = vadd.f32 %v299, %v1403
  %1405 = vmatmul.bf16.gmra.mxu0 %v869
  %v1406 = vpop.f32.mrf.mxu0
  %v1407 = vadd.f32 %v299, %v1406
  %v1408 = vpop.f32.mrf.mxu0
  %v1409 = vadd.f32 %v299, %v1408
  %1410 = vmatmul.bf16.gmra.mxu0 %v870
  %v1411 = vpop.f32.mrf.mxu0
  %v1412 = vadd.f32 %v299, %v1411
  %v1413 = vpop.f32.mrf.mxu0
  %v1414 = vadd.f32 %v299, %v1413
  %1415 = vmatmul.bf16.gmra.mxu0 %v871
  %v1416 = vpop.f32.mrf.mxu0
  %v1417 = vadd.f32 %v299, %v1416
  %v1418 = vpop.f32.mrf.mxu0
  %v1419 = vadd.f32 %v299, %v1418
  %1420 = vmatmul.bf16.gmra.mxu0 %v872
  %v1421 = vpop.f32.mrf.mxu0
  %v1422 = vadd.f32 %v299, %v1421
  %v1423 = vpop.f32.mrf.mxu0
  %v1424 = vadd.f32 %v299, %v1423
  %1425 = vmatmul.bf16.gmra.mxu0 %v873
  %v1426 = vpop.f32.mrf.mxu0
  %v1427 = vadd.f32 %v299, %v1426
  %v1428 = vpop.f32.mrf.mxu0
  %v1429 = vadd.f32 %v299, %v1428
  %1430 = vmatmul.bf16.gmra.mxu0 %v874
  %v1431 = vpop.f32.mrf.mxu0
  %v1432 = vadd.f32 %v299, %v1431
  %v1433 = vpop.f32.mrf.mxu0
  %v1434 = vadd.f32 %v299, %v1433
  %1435 = vmatmul.bf16.gmra.mxu0 %v875
  %v1436 = vpop.f32.mrf.mxu0
  %v1437 = vadd.f32 %v299, %v1436
  %v1438 = vpop.f32.mrf.mxu0
  %v1439 = vadd.f32 %v299, %v1438
  %1440 = vmatmul.bf16.gmra.mxu0 %v876
  %v1441 = vpop.f32.mrf.mxu0
  %v1442 = vadd.f32 %v299, %v1441
  %v1443 = vpop.f32.mrf.mxu0
  %v1444 = vadd.f32 %v299, %v1443
  %1445 = vmatmul.bf16.gmra.mxu0 %v877
  %v1446 = vpop.f32.mrf.mxu0
  %v1447 = vadd.f32 %v299, %v1446
  %v1448 = vpop.f32.mrf.mxu0
  %v1449 = vadd.f32 %v299, %v1448
  %1450 = vmatmul.bf16.gmra.mxu0 %v878
  %v1451 = vpop.f32.mrf.mxu0
  %v1452 = vadd.f32 %v299, %v1451
  %v1453 = vpop.f32.mrf.mxu0
  %v1454 = vadd.f32 %v299, %v1453
  %1455 = vmatmul.bf16.gmra.mxu0 %v879
  %v1456 = vpop.f32.mrf.mxu0
  %v1457 = vadd.f32 %v299, %v1456
  %v1458 = vpop.f32.mrf.mxu0
  %v1459 = vadd.f32 %v299, %v1458
  %1460 = vmatmul.bf16.gmra.mxu0 %v880
  %v1461 = vpop.f32.mrf.mxu0
  %v1462 = vadd.f32 %v299, %v1461
  %v1463 = vpop.f32.mrf.mxu0
  %v1464 = vadd.f32 %v299, %v1463
  %1465 = vmatmul.bf16.gmra.mxu0 %v881
  %v1466 = vpop.f32.mrf.mxu0
  %v1467 = vadd.f32 %v299, %v1466
  %v1468 = vpop.f32.mrf.mxu0
  %v1469 = vadd.f32 %v299, %v1468
  %1470 = vmatmul.bf16.gmra.mxu0 %v882
  %v1471 = vpop.f32.mrf.mxu0
  %v1472 = vadd.f32 %v299, %v1471
  %v1473 = vpop.f32.mrf.mxu0
  %v1474 = vadd.f32 %v299, %v1473
  %1475 = vmatmul.bf16.gmra.mxu0 %v883
  %v1476 = vpop.f32.mrf.mxu0
  %v1477 = vadd.f32 %v299, %v1476
  %v1478 = vpop.f32.mrf.mxu0
  %v1479 = vadd.f32 %v299, %v1478
  %1480 = vmatmul.bf16.gmra.mxu0 %v884
  %v1481 = vpop.f32.mrf.mxu0
  %v1482 = vadd.f32 %v299, %v1481
  %v1483 = vpop.f32.mrf.mxu0
  %v1484 = vadd.f32 %v299, %v1483
  %1485 = vmatmul.bf16.gmra.mxu0 %v885
  %v1486 = vpop.f32.mrf.mxu0
  %v1487 = vadd.f32 %v299, %v1486
  %v1488 = vpop.f32.mrf.mxu0
  %v1489 = vadd.f32 %v299, %v1488
  %1490 = vmatmul.bf16.gmra.mxu0 %v886
  %v1491 = vpop.f32.mrf.mxu0
  %v1492 = vadd.f32 %v299, %v1491
  %v1493 = vpop.f32.mrf.mxu0
  %v1494 = vadd.f32 %v299, %v1493
  %1495 = vmatmul.bf16.gmra.mxu0 %v887
  %v1496 = vpop.f32.mrf.mxu0
  %v1497 = vadd.f32 %v299, %v1496
  %v1498 = vpop.f32.mrf.mxu0
  %v1499 = vadd.f32 %v299, %v1498
  %1500 = vmatmul.bf16.gmra.mxu0 %v888
  %v1501 = vpop.f32.mrf.mxu0
  %v1502 = vadd.f32 %v299, %v1501
  %v1503 = vpop.f32.mrf.mxu0
  %v1504 = vadd.f32 %v299, %v1503
  %1505 = vmatmul.bf16.gmra.mxu0 %v889
  %v1506 = vpop.f32.mrf.mxu0
  %v1507 = vadd.f32 %v299, %v1506
  %v1508 = vpop.f32.mrf.mxu0
  %v1509 = vadd.f32 %v299, %v1508
  %1510 = vmatmul.bf16.gmra.mxu0 %v890
  %v1511 = vpop.f32.mrf.mxu0
  %v1512 = vadd.f32 %v299, %v1511
  %v1513 = vpop.f32.mrf.mxu0
  %v1514 = vadd.f32 %v299, %v1513
  %1515 = vmatmul.bf16.gmra.mxu0 %v891
  %v1516 = vpop.f32.mrf.mxu0
  %v1517 = vadd.f32 %v299, %v1516
  %v1518 = vpop.f32.mrf.mxu0
  %v1519 = vadd.f32 %v299, %v1518
  %1520 = vmatmul.bf16.gmra.mxu0 %v892
  %v1521 = vpop.f32.mrf.mxu0
  %v1522 = vadd.f32 %v299, %v1521
  %v1523 = vpop.f32.mrf.mxu0
  %v1524 = vadd.f32 %v299, %v1523
  %1525 = vmatmul.bf16.gmra.mxu0 %v893
  %v1526 = vpop.f32.mrf.mxu0
  %v1527 = vadd.f32 %v299, %v1526
  %v1528 = vpop.f32.mrf.mxu0
  %v1529 = vadd.f32 %v299, %v1528
  %1530 = vmatmul.bf16.gmra.mxu0 %v894
  %v1531 = vpop.f32.mrf.mxu0
  %v1532 = vadd.f32 %v299, %v1531
  %v1533 = vpop.f32.mrf.mxu0
  %v1534 = vadd.f32 %v299, %v1533
  %1535 = vmatmul.bf16.gmra.mxu0 %v895
  %v1536 = vpop.f32.mrf.mxu0
  %v1537 = vadd.f32 %v299, %v1536
  %v1538 = vpop.f32.mrf.mxu0
  %v1539 = vadd.f32 %v299, %v1538
  %1540 = vmatmul.bf16.gmra.mxu0 %v896
  %v1541 = vpop.f32.mrf.mxu0
  %v1542 = vadd.f32 %v299, %v1541
  %v1543 = vpop.f32.mrf.mxu0
  %v1544 = vadd.f32 %v299, %v1543
  %1545 = vmatmul.bf16.gmra.mxu0 %v897
  %v1546 = vpop.f32.mrf.mxu0
  %v1547 = vadd.f32 %v299, %v1546
  %v1548 = vpop.f32.mrf.mxu0
  %v1549 = vadd.f32 %v299, %v1548
  %1550 = vmatmul.bf16.gmra.mxu0 %v898
  %v1551 = vpop.f32.mrf.mxu0
  %v1552 = vadd.f32 %v299, %v1551
  %v1553 = vpop.f32.mrf.mxu0
  %v1554 = vadd.f32 %v299, %v1553
  %1555 = vmatmul.bf16.gmra.mxu0 %v899
  %v1556 = vpop.f32.mrf.mxu0
  %v1557 = vadd.f32 %v299, %v1556
  %v1558 = vpop.f32.mrf.mxu0
  %v1559 = vadd.f32 %v299, %v1558
  %1560 = vmatmul.bf16.gmra.mxu0 %v900
  %v1561 = vpop.f32.mrf.mxu0
  %v1562 = vadd.f32 %v299, %v1561
  %v1563 = vpop.f32.mrf.mxu0
  %v1564 = vadd.f32 %v299, %v1563
  %1565 = vmatmul.bf16.gmra.mxu0 %v901
  %v1566 = vpop.f32.mrf.mxu0
  %v1567 = vadd.f32 %v299, %v1566
  %v1568 = vpop.f32.mrf.mxu0
  %v1569 = vadd.f32 %v299, %v1568
  %1570 = vmatmul.bf16.gmra.mxu0 %v902
  %v1571 = vpop.f32.mrf.mxu0
  %v1572 = vadd.f32 %v299, %v1571
  %v1573 = vpop.f32.mrf.mxu0
  %v1574 = vadd.f32 %v299, %v1573
  %1575 = vmatmul.bf16.gmra.mxu0 %v903
  %v1576 = vpop.f32.mrf.mxu0
  %v1577 = vadd.f32 %v299, %v1576
  %v1578 = vpop.f32.mrf.mxu0
  %v1579 = vadd.f32 %v299, %v1578
  %1580 = vmatmul.bf16.gmra.mxu0 %v904
  %v1581 = vpop.f32.mrf.mxu0
  %v1582 = vadd.f32 %v299, %v1581
  %v1583 = vpop.f32.mrf.mxu0
  %v1584 = vadd.f32 %v299, %v1583
  %1585 = vmatmul.bf16.gmra.mxu0 %v905
  %v1586 = vpop.f32.mrf.mxu0
  %v1587 = vadd.f32 %v299, %v1586
  %v1588 = vpop.f32.mrf.mxu0
  %v1589 = vadd.f32 %v299, %v1588
  %1590 = vmatmul.bf16.gmra.mxu0 %v906
  %v1591 = vpop.f32.mrf.mxu0
  %v1592 = vadd.f32 %v299, %v1591
  %v1593 = vpop.f32.mrf.mxu0
  %v1594 = vadd.f32 %v299, %v1593
  %1595 = vmatmul.bf16.gmra.mxu0 %v907
  %v1596 = vpop.f32.mrf.mxu0
  %v1597 = vadd.f32 %v299, %v1596
  %v1598 = vpop.f32.mrf.mxu0
  %v1599 = vadd.f32 %v299, %v1598
  %1600 = vmatmul.bf16.gmra.mxu0 %v908
  %v1601 = vpop.f32.mrf.mxu0
  %v1602 = vadd.f32 %v299, %v1601
  %v1603 = vpop.f32.mrf.mxu0
  %v1604 = vadd.f32 %v299, %v1603
  %1605 = vmatmul.bf16.gmra.mxu0 %v909
  %v1606 = vpop.f32.mrf.mxu0
  %v1607 = vadd.f32 %v299, %v1606
  %v1608 = vpop.f32.mrf.mxu0
  %v1609 = vadd.f32 %v299, %v1608
  %1610 = vmatmul.bf16.gmra.mxu0 %v910
  %v1611 = vpop.f32.mrf.mxu0
  %v1612 = vadd.f32 %v299, %v1611
  %v1613 = vpop.f32.mrf.mxu0
  %v1614 = vadd.f32 %v299, %v1613
  %1615 = vmatmul.bf16.gmra.mxu0 %v911
  %v1616 = vpop.f32.mrf.mxu0
  %v1617 = vadd.f32 %v299, %v1616
  %v1618 = vpop.f32.mrf.mxu0
  %v1619 = vadd.f32 %v299, %v1618
  %1620 = vmatmul.bf16.gmra.mxu0 %v912
  %v1621 = vpop.f32.mrf.mxu0
  %v1622 = vadd.f32 %v299, %v1621
  %v1623 = vpop.f32.mrf.mxu0
  %v1624 = vadd.f32 %v299, %v1623
  %1625 = vmatmul.bf16.gmra.mxu0 %v913
  %v1626 = vpop.f32.mrf.mxu0
  %v1627 = vadd.f32 %v299, %v1626
  %v1628 = vpop.f32.mrf.mxu0
  %v1629 = vadd.f32 %v299, %v1628
  %1630 = vmatmul.bf16.gmra.mxu0 %v914
  %v1631 = vpop.f32.mrf.mxu0
  %v1632 = vadd.f32 %v299, %v1631
  %v1633 = vpop.f32.mrf.mxu0
  %v1634 = vadd.f32 %v299, %v1633
  %1635 = vmatmul.bf16.gmra.mxu0 %v915
  %v1636 = vpop.f32.mrf.mxu0
  %v1637 = vadd.f32 %v299, %v1636
  %v1638 = vpop.f32.mrf.mxu0
  %v1639 = vadd.f32 %v299, %v1638
  %1640 = vmatmul.bf16.gmra.mxu0 %v916
  %v1641 = vpop.f32.mrf.mxu0
  %v1642 = vadd.f32 %v299, %v1641
  %v1643 = vpop.f32.mrf.mxu0
  %v1644 = vadd.f32 %v299, %v1643
  %1645 = vmatmul.bf16.gmra.mxu0 %v917
  %v1646 = vpop.f32.mrf.mxu0
  %v1647 = vadd.f32 %v299, %v1646
  %v1648 = vpop.f32.mrf.mxu0
  %v1649 = vadd.f32 %v299, %v1648
  %1650 = vmatmul.bf16.gmra.mxu0 %v918
  %v1651 = vpop.f32.mrf.mxu0
  %v1652 = vadd.f32 %v299, %v1651
  %v1653 = vpop.f32.mrf.mxu0
  %v1654 = vadd.f32 %v299, %v1653
  %1655 = vmatmul.bf16.gmra.mxu0 %v919
  %v1656 = vpop.f32.mrf.mxu0
  %v1657 = vadd.f32 %v299, %v1656
  %v1658 = vpop.f32.mrf.mxu0
  %v1659 = vadd.f32 %v299, %v1658
  %1660 = vmatmul.bf16.gmra.mxu0 %v920
  %v1661 = vpop.f32.mrf.mxu0
  %v1662 = vadd.f32 %v299, %v1661
  %v1663 = vpop.f32.mrf.mxu0
  %v1664 = vadd.f32 %v299, %v1663
  %1665 = vmatmul.bf16.gmra.mxu0 %v921
  %v1666 = vpop.f32.mrf.mxu0
  %v1667 = vadd.f32 %v299, %v1666
  %v1668 = vpop.f32.mrf.mxu0
  %v1669 = vadd.f32 %v299, %v1668
  %1670 = vmatmul.bf16.gmra.mxu0 %v922
  %v1671 = vpop.f32.mrf.mxu0
  %v1672 = vadd.f32 %v299, %v1671
  %v1673 = vpop.f32.mrf.mxu0
  %v1674 = vadd.f32 %v299, %v1673
  %1675 = vmatmul.bf16.gmra.mxu0 %v923
  %v1676 = vpop.f32.mrf.mxu0
  %v1677 = vadd.f32 %v299, %v1676
  %v1678 = vpop.f32.mrf.mxu0
  %v1679 = vadd.f32 %v299, %v1678
  %1680 = vmatmul.bf16.gmra.mxu0 %v924
  %v1681 = vpop.f32.mrf.mxu0
  %v1682 = vadd.f32 %v299, %v1681
  %v1683 = vpop.f32.mrf.mxu0
  %v1684 = vadd.f32 %v299, %v1683
  %1685 = vmatmul.bf16.gmra.mxu0 %v925
  %v1686 = vpop.f32.mrf.mxu0
  %v1687 = vadd.f32 %v299, %v1686
  %v1688 = vpop.f32.mrf.mxu0
  %v1689 = vadd.f32 %v299, %v1688
  %1690 = vmatmul.bf16.gmra.mxu0 %v926
  %v1691 = vpop.f32.mrf.mxu0
  %v1692 = vadd.f32 %v299, %v1691
  %v1693 = vpop.f32.mrf.mxu0
  %v1694 = vadd.f32 %v299, %v1693
  %1695 = vmatmul.bf16.gmra.mxu0 %v927
  %v1696 = vpop.f32.mrf.mxu0
  %v1697 = vadd.f32 %v299, %v1696
  %v1698 = vpop.f32.mrf.mxu0
  %v1699 = vadd.f32 %v299, %v1698
  %1700 = vmatmul.bf16.gmra.mxu0 %v928
  %v1701 = vpop.f32.mrf.mxu0
  %v1702 = vadd.f32 %v299, %v1701
  %v1703 = vpop.f32.mrf.mxu0
  %v1704 = vadd.f32 %v299, %v1703
  %1705 = vmatmul.bf16.gmra.mxu0 %v929
  %v1706 = vpop.f32.mrf.mxu0
  %v1707 = vadd.f32 %v299, %v1706
  %v1708 = vpop.f32.mrf.mxu0
  %v1709 = vadd.f32 %v299, %v1708
  %1710 = vmatmul.bf16.gmra.mxu0 %v930
  %v1711 = vpop.f32.mrf.mxu0
  %v1712 = vadd.f32 %v299, %v1711
  %v1713 = vpop.f32.mrf.mxu0
  %v1714 = vadd.f32 %v299, %v1713
  %1715 = vmatmul.bf16.gmra.mxu0 %v931
  %v1716 = vpop.f32.mrf.mxu0
  %v1717 = vadd.f32 %v299, %v1716
  %v1718 = vpop.f32.mrf.mxu0
  %v1719 = vadd.f32 %v299, %v1718
  %1720 = vmatmul.bf16.gmra.mxu0 %v932
  %v1721 = vpop.f32.mrf.mxu0
  %v1722 = vadd.f32 %v299, %v1721
  %v1723 = vpop.f32.mrf.mxu0
  %v1724 = vadd.f32 %v299, %v1723
  %1725 = vmatmul.bf16.gmra.mxu0 %v933
  %v1726 = vpop.f32.mrf.mxu0
  %v1727 = vadd.f32 %v299, %v1726
  %v1728 = vpop.f32.mrf.mxu0
  %v1729 = vadd.f32 %v299, %v1728
  %1730 = vmatmul.bf16.gmra.mxu0 %v934
  %v1731 = vpop.f32.mrf.mxu0
  %v1732 = vadd.f32 %v299, %v1731
  %v1733 = vpop.f32.mrf.mxu0
  %v1734 = vadd.f32 %v299, %v1733
  %1735 = vmatmul.bf16.gmra.mxu0 %v935
  %v1736 = vpop.f32.mrf.mxu0
  %v1737 = vadd.f32 %v299, %v1736
  %v1738 = vpop.f32.mrf.mxu0
  %v1739 = vadd.f32 %v299, %v1738
  %1740 = vmatmul.bf16.gmra.mxu0 %v936
  %v1741 = vpop.f32.mrf.mxu0
  %v1742 = vadd.f32 %v299, %v1741
  %v1743 = vpop.f32.mrf.mxu0
  %v1744 = vadd.f32 %v299, %v1743
  %1745 = vmatmul.bf16.gmra.mxu0 %v937
  %v1746 = vpop.f32.mrf.mxu0
  %v1747 = vadd.f32 %v299, %v1746
  %v1748 = vpop.f32.mrf.mxu0
  %v1749 = vadd.f32 %v299, %v1748
  %1750 = vmatmul.bf16.gmra.mxu0 %v938
  %v1751 = vpop.f32.mrf.mxu0
  %v1752 = vadd.f32 %v299, %v1751
  %v1753 = vpop.f32.mrf.mxu0
  %v1754 = vadd.f32 %v299, %v1753
  %1755 = vmatmul.bf16.gmra.mxu0 %v939
  %v1756 = vpop.f32.mrf.mxu0
  %v1757 = vadd.f32 %v299, %v1756
  %v1758 = vpop.f32.mrf.mxu0
  %v1759 = vadd.f32 %v299, %v1758
  %1760 = vmatmul.bf16.gmra.mxu0 %v940
  %v1761 = vpop.f32.mrf.mxu0
  %v1762 = vadd.f32 %v299, %v1761
  %v1763 = vpop.f32.mrf.mxu0
  %v1764 = vadd.f32 %v299, %v1763
  %1765 = vdwg.mxu0
  %v1766 = vmax.f32 %v1127, 0.0
  %v1767 = vmax.f32 %v1129, 0.0
  %v1768 = vmax.f32 %v1132, 0.0
  %v1769 = vmax.f32 %v1134, 0.0
  %v1770 = vmax.f32 %v1137, 0.0
  %v1771 = vmax.f32 %v1139, 0.0
  %v1772 = vmax.f32 %v1142, 0.0
  %v1773 = vmax.f32 %v1144, 0.0
  %v1774 = vmax.f32 %v1147, 0.0
  %v1775 = vmax.f32 %v1149, 0.0
  %v1776 = vmax.f32 %v1152, 0.0
  %v1777 = vmax.f32 %v1154, 0.0
  %v1778 = vmax.f32 %v1157, 0.0
  %v1779 = vmax.f32 %v1159, 0.0
  %v1780 = vmax.f32 %v1162, 0.0
  %v1781 = vmax.f32 %v1164, 0.0
  %v1782 = vmax.f32 %v1167, 0.0
  %v1783 = vmax.f32 %v1169, 0.0
  %v1784 = vmax.f32 %v1172, 0.0
  %v1785 = vmax.f32 %v1174, 0.0
  %v1786 = vmax.f32 %v1177, 0.0
  %v1787 = vmax.f32 %v1179, 0.0
  %v1788 = vmax.f32 %v1182, 0.0
  %v1789 = vmax.f32 %v1184, 0.0
  %v1790 = vmax.f32 %v1187, 0.0
  %v1791 = vmax.f32 %v1189, 0.0
  %v1792 = vmax.f32 %v1192, 0.0
  %v1793 = vmax.f32 %v1194, 0.0
  %v1794 = vmax.f32 %v1197, 0.0
  %v1795 = vmax.f32 %v1199, 0.0
  %v1796 = vmax.f32 %v1202, 0.0
  %v1797 = vmax.f32 %v1204, 0.0
  %v1798 = vmax.f32 %v1207, 0.0
  %v1799 = vmax.f32 %v1209, 0.0
  %v1800 = vmax.f32 %v1212, 0.0
  %v1801 = vmax.f32 %v1214, 0.0
  %v1802 = vmax.f32 %v1217, 0.0
  %v1803 = vmax.f32 %v1219, 0.0
  %v1804 = vmax.f32 %v1222, 0.0
  %v1805 = vmax.f32 %v1224, 0.0
  %v1806 = vmax.f32 %v1227, 0.0
  %v1807 = vmax.f32 %v1229, 0.0
  %v1808 = vmax.f32 %v1232, 0.0
  %v1809 = vmax.f32 %v1234, 0.0
  %v1810 = vmax.f32 %v1237, 0.0
  %v1811 = vmax.f32 %v1239, 0.0
  %v1812 = vmax.f32 %v1242, 0.0
  %v1813 = vmax.f32 %v1244, 0.0
  %v1814 = vmax.f32 %v1247, 0.0
  %v1815 = vmax.f32 %v1249, 0.0
  %v1816 = vmax.f32 %v1252, 0.0
  %v1817 = vmax.f32 %v1254, 0.0
  %v1818 = vmax.f32 %v1257, 0.0
  %v1819 = vmax.f32 %v1259, 0.0
  %v1820 = vmax.f32 %v1262, 0.0
  %v1821 = vmax.f32 %v1264, 0.0
  %v1822 = vmax.f32 %v1267, 0.0
  %v1823 = vmax.f32 %v1269, 0.0
  %v1824 = vmax.f32 %v1272, 0.0
  %v1825 = vmax.f32 %v1274, 0.0
  %v1826 = vmax.f32 %v1277, 0.0
  %v1827 = vmax.f32 %v1279, 0.0
  %v1828 = vmax.f32 %v1282, 0.0
  %v1829 = vmax.f32 %v1284, 0.0
  %v1830 = vmax.f32 %v1287, 0.0
  %v1831 = vmax.f32 %v1289, 0.0
  %v1832 = vmax.f32 %v1292, 0.0
  %v1833 = vmax.f32 %v1294, 0.0
  %v1834 = vmax.f32 %v1297, 0.0
  %v1835 = vmax.f32 %v1299, 0.0
  %v1836 = vmax.f32 %v1302, 0.0
  %v1837 = vmax.f32 %v1304, 0.0
  %v1838 = vmax.f32 %v1307, 0.0
  %v1839 = vmax.f32 %v1309, 0.0
  %v1840 = vmax.f32 %v1312, 0.0
  %v1841 = vmax.f32 %v1314, 0.0
  %v1842 = vmax.f32 %v1317, 0.0
  %v1843 = vmax.f32 %v1319, 0.0
  %v1844 = vmax.f32 %v1322, 0.0
  %v1845 = vmax.f32 %v1324, 0.0
  %v1846 = vmax.f32 %v1327, 0.0
  %v1847 = vmax.f32 %v1329, 0.0
  %v1848 = vmax.f32 %v1332, 0.0
  %v1849 = vmax.f32 %v1334, 0.0
  %v1850 = vmax.f32 %v1337, 0.0
  %v1851 = vmax.f32 %v1339, 0.0
  %v1852 = vmax.f32 %v1342, 0.0
  %v1853 = vmax.f32 %v1344, 0.0
  %v1854 = vmax.f32 %v1347, 0.0
  %v1855 = vmax.f32 %v1349, 0.0
  %v1856 = vmax.f32 %v1352, 0.0
  %v1857 = vmax.f32 %v1354, 0.0
  %v1858 = vmax.f32 %v1357, 0.0
  %v1859 = vmax.f32 %v1359, 0.0
  %v1860 = vmax.f32 %v1362, 0.0
  %v1861 = vmax.f32 %v1364, 0.0
  %v1862 = vmax.f32 %v1367, 0.0
  %v1863 = vmax.f32 %v1369, 0.0
  %v1864 = vmax.f32 %v1372, 0.0
  %v1865 = vmax.f32 %v1374, 0.0
  %v1866 = vmax.f32 %v1377, 0.0
  %v1867 = vmax.f32 %v1379, 0.0
  %v1868 = vmax.f32 %v1382, 0.0
  %v1869 = vmax.f32 %v1384, 0.0
  %v1870 = vmax.f32 %v1387, 0.0
  %v1871 = vmax.f32 %v1389, 0.0
  %v1872 = vmax.f32 %v1392, 0.0
  %v1873 = vmax.f32 %v1394, 0.0
  %v1874 = vmax.f32 %v1397, 0.0
  %v1875 = vmax.f32 %v1399, 0.0
  %v1876 = vmax.f32 %v1402, 0.0
  %v1877 = vmax.f32 %v1404, 0.0
  %v1878 = vmax.f32 %v1407, 0.0
  %v1879 = vmax.f32 %v1409, 0.0
  %v1880 = vmax.f32 %v1412, 0.0
  %v1881 = vmax.f32 %v1414, 0.0
  %v1882 = vmax.f32 %v1417, 0.0
  %v1883 = vmax.f32 %v1419, 0.0
  %v1884 = vmax.f32 %v1422, 0.0
  %v1885 = vmax.f32 %v1424, 0.0
  %v1886 = vmax.f32 %v1427, 0.0
  %v1887 = vmax.f32 %v1429, 0.0
  %v1888 = vmax.f32 %v1432, 0.0
  %v1889 = vmax.f32 %v1434, 0.0
  %v1890 = vmax.f32 %v1437, 0.0
  %v1891 = vmax.f32 %v1439, 0.0
  %v1892 = vmax.f32 %v1442, 0.0
  %v1893 = vmax.f32 %v1444, 0.0
  %v1894 = vmax.f32 %v1447, 0.0
  %v1895 = vmax.f32 %v1449, 0.0
  %v1896 = vmax.f32 %v1452, 0.0
  %v1897 = vmax.f32 %v1454, 0.0
  %v1898 = vmax.f32 %v1457, 0.0
  %v1899 = vmax.f32 %v1459, 0.0
  %v1900 = vmax.f32 %v1462, 0.0
  %v1901 = vmax.f32 %v1464, 0.0
  %v1902 = vmax.f32 %v1467, 0.0
  %v1903 = vmax.f32 %v1469, 0.0
  %v1904 = vmax.f32 %v1472, 0.0
  %v1905 = vmax.f32 %v1474, 0.0
  %v1906 = vmax.f32 %v1477, 0.0
  %v1907 = vmax.f32 %v1479, 0.0
  %v1908 = vmax.f32 %v1482, 0.0
  %v1909 = vmax.f32 %v1484, 0.0
  %v1910 = vmax.f32 %v1487, 0.0
  %v1911 = vmax.f32 %v1489, 0.0
  %v1912 = vmax.f32 %v1492, 0.0
  %v1913 = vmax.f32 %v1494, 0.0
  %v1914 = vmax.f32 %v1497, 0.0
  %v1915 = vmax.f32 %v1499, 0.0
  %v1916 = vmax.f32 %v1502, 0.0
  %v1917 = vmax.f32 %v1504, 0.0
  %v1918 = vmax.f32 %v1507, 0.0
  %v1919 = vmax.f32 %v1509, 0.0
  %v1920 = vmax.f32 %v1512, 0.0
  %v1921 = vmax.f32 %v1514, 0.0
  %v1922 = vmax.f32 %v1517, 0.0
  %v1923 = vmax.f32 %v1519, 0.0
  %v1924 = vmax.f32 %v1522, 0.0
  %v1925 = vmax.f32 %v1524, 0.0
  %v1926 = vmax.f32 %v1527, 0.0
  %v1927 = vmax.f32 %v1529, 0.0
  %v1928 = vmax.f32 %v1532, 0.0
  %v1929 = vmax.f32 %v1534, 0.0
  %v1930 = vmax.f32 %v1537, 0.0
  %v1931 = vmax.f32 %v1539, 0.0
  %v1932 = vmax.f32 %v1542, 0.0
  %v1933 = vmax.f32 %v1544, 0.0
  %v1934 = vmax.f32 %v1547, 0.0
  %v1935 = vmax.f32 %v1549, 0.0
  %v1936 = vmax.f32 %v1552, 0.0
  %v1937 = vmax.f32 %v1554, 0.0
  %v1938 = vmax.f32 %v1557, 0.0
  %v1939 = vmax.f32 %v1559, 0.0
  %v1940 = vmax.f32 %v1562, 0.0
  %v1941 = vmax.f32 %v1564, 0.0
  %v1942 = vmax.f32 %v1567, 0.0
  %v1943 = vmax.f32 %v1569, 0.0
  %v1944 = vmax.f32 %v1572, 0.0
  %v1945 = vmax.f32 %v1574, 0.0
  %v1946 = vmax.f32 %v1577, 0.0
  %v1947 = vmax.f32 %v1579, 0.0
  %v1948 = vmax.f32 %v1582, 0.0
  %v1949 = vmax.f32 %v1584, 0.0
  %v1950 = vmax.f32 %v1587, 0.0
  %v1951 = vmax.f32 %v1589, 0.0
  %v1952 = vmax.f32 %v1592, 0.0
  %v1953 = vmax.f32 %v1594, 0.0
  %v1954 = vmax.f32 %v1597, 0.0
  %v1955 = vmax.f32 %v1599, 0.0
  %v1956 = vmax.f32 %v1602, 0.0
  %v1957 = vmax.f32 %v1604, 0.0
  %v1958 = vmax.f32 %v1607, 0.0
  %v1959 = vmax.f32 %v1609, 0.0
  %v1960 = vmax.f32 %v1612, 0.0
  %v1961 = vmax.f32 %v1614, 0.0
  %v1962 = vmax.f32 %v1617, 0.0
  %v1963 = vmax.f32 %v1619, 0.0
  %v1964 = vmax.f32 %v1622, 0.0
  %v1965 = vmax.f32 %v1624, 0.0
  %v1966 = vmax.f32 %v1627, 0.0
  %v1967 = vmax.f32 %v1629, 0.0
  %v1968 = vmax.f32 %v1632, 0.0
  %v1969 = vmax.f32 %v1634, 0.0
  %v1970 = vmax.f32 %v1637, 0.0
  %v1971 = vmax.f32 %v1639, 0.0
  %v1972 = vmax.f32 %v1642, 0.0
  %v1973 = vmax.f32 %v1644, 0.0
  %v1974 = vmax.f32 %v1647, 0.0
  %v1975 = vmax.f32 %v1649, 0.0
  %v1976 = vmax.f32 %v1652, 0.0
  %v1977 = vmax.f32 %v1654, 0.0
  %v1978 = vmax.f32 %v1657, 0.0
  %v1979 = vmax.f32 %v1659, 0.0
  %v1980 = vmax.f32 %v1662, 0.0
  %v1981 = vmax.f32 %v1664, 0.0
  %v1982 = vmax.f32 %v1667, 0.0
  %v1983 = vmax.f32 %v1669, 0.0
  %v1984 = vmax.f32 %v1672, 0.0
  %v1985 = vmax.f32 %v1674, 0.0
  %v1986 = vmax.f32 %v1677, 0.0
  %v1987 = vmax.f32 %v1679, 0.0
  %v1988 = vmax.f32 %v1682, 0.0
  %v1989 = vmax.f32 %v1684, 0.0
  %v1990 = vmax.f32 %v1687, 0.0
  %v1991 = vmax.f32 %v1689, 0.0
  %v1992 = vmax.f32 %v1692, 0.0
  %v1993 = vmax.f32 %v1694, 0.0
  %v1994 = vmax.f32 %v1697, 0.0
  %v1995 = vmax.f32 %v1699, 0.0
  %v1996 = vmax.f32 %v1702, 0.0
  %v1997 = vmax.f32 %v1704, 0.0
  %v1998 = vmax.f32 %v1707, 0.0
  %v1999 = vmax.f32 %v1709, 0.0
  %v2000 = vmax.f32 %v1712, 0.0
  %v2001 = vmax.f32 %v1714, 0.0
  %v2002 = vmax.f32 %v1717, 0.0
  %v2003 = vmax.f32 %v1719, 0.0
  %v2004 = vmax.f32 %v1722, 0.0
  %v2005 = vmax.f32 %v1724, 0.0
  %v2006 = vmax.f32 %v1727, 0.0
  %v2007 = vmax.f32 %v1729, 0.0
  %v2008 = vmax.f32 %v1732, 0.0
  %v2009 = vmax.f32 %v1734, 0.0
  %v2010 = vmax.f32 %v1737, 0.0
  %v2011 = vmax.f32 %v1739, 0.0
  %v2012 = vmax.f32 %v1742, 0.0
  %v2013 = vmax.f32 %v1744, 0.0
  %v2014 = vmax.f32 %v1747, 0.0
  %v2015 = vmax.f32 %v1749, 0.0
  %v2016 = vmax.f32 %v1752, 0.0
  %v2017 = vmax.f32 %v1754, 0.0
  %v2018 = vmax.f32 %v1757, 0.0
  %v2019 = vmax.f32 %v1759, 0.0
  %v2020 = vmax.f32 %v1762, 0.0
  %v2021 = vmax.f32 %v1764, 0.0
  %v2022 = vld [vmem:[#allocation2] sm:$0xff]
  %v2023 = vadd.f32 %v1766, %v1767
  %v2024 = vadd.f32 %v2023, %v1768
  %v2025 = vadd.f32 %v2024, %v1769
  %v2026 = vadd.f32 %v2025, %v1770
  %v2027 = vadd.f32 %v2026, %v1771
  %v2028 = vadd.f32 %v2027, %v1772
  %v2029 = vadd.f32 %v2028, %v1773
  %v2030 = vadd.f32 %v2029, %v1774
  %v2031 = vadd.f32 %v2030, %v1775
  %v2032 = vadd.f32 %v2031, %v1776
  %v2033 = vadd.f32 %v2032, %v1777
  %v2034 = vadd.f32 %v2033, %v1778
  %v2035 = vadd.f32 %v2034, %v1779
  %v2036 = vadd.f32 %v2035, %v1780
  %v2037 = vadd.f32 %v2036, %v1781
  %v2038 = vadd.f32 %v2037, %v1782
  %v2039 = vadd.f32 %v2038, %v1783
  %v2040 = vadd.f32 %v2039, %v1784
  %v2041 = vadd.f32 %v2040, %v1785
  %v2042 = vadd.f32 %v2041, %v1786
  %v2043 = vadd.f32 %v2042, %v1787
  %v2044 = vadd.f32 %v2043, %v1788
  %v2045 = vadd.f32 %v2044, %v1789
  %v2046 = vadd.f32 %v2045, %v1790
  %v2047 = vadd.f32 %v2046, %v1791
  %v2048 = vadd.f32 %v2047, %v1792
  %v2049 = vadd.f32 %v2048, %v1793
  %v2050 = vadd.f32 %v2049, %v1794
  %v2051 = vadd.f32 %v2050, %v1795
  %v2052 = vadd.f32 %v2051, %v1796
  %v2053 = vadd.f32 %v2052, %v1797
  %v2054 = vrot.slane %v2053, 4
  %v2055 = vadd.f32 %v2053, %v2054
  %v2056 = vrot.slane %v2055, 2
  %v2057 = vadd.f32 %v2055, %v2056
  %v2058 = vrot.slane %v2057, 1
  %v2059 = vadd.f32 %v2057, %v2058
  %v2060 = vadd.f32 %v1798, %v1799
  %v2061 = vadd.f32 %v2060, %v1800
  %v2062 = vadd.f32 %v2061, %v1801
  %v2063 = vadd.f32 %v2062, %v1802
  %v2064 = vadd.f32 %v2063, %v1803
  %v2065 = vadd.f32 %v2064, %v1804
  %v2066 = vadd.f32 %v2065, %v1805
  %v2067 = vadd.f32 %v2066, %v1806
  %v2068 = vadd.f32 %v2067, %v1807
  %v2069 = vadd.f32 %v2068, %v1808
  %v2070 = vadd.f32 %v2069, %v1809
  %v2071 = vadd.f32 %v2070, %v1810
  %v2072 = vadd.f32 %v2071, %v1811
  %v2073 = vadd.f32 %v2072, %v1812
  %v2074 = vadd.f32 %v2073, %v1813
  %v2075 = vadd.f32 %v2074, %v1814
  %v2076 = vadd.f32 %v2075, %v1815
  %v2077 = vadd.f32 %v2076, %v1816
  %v2078 = vadd.f32 %v2077, %v1817
  %v2079 = vadd.f32 %v2078, %v1818
  %v2080 = vadd.f32 %v2079, %v1819
  %v2081 = vadd.f32 %v2080, %v1820
  %v2082 = vadd.f32 %v2081, %v1821
  %v2083 = vadd.f32 %v2082, %v1822
  %v2084 = vadd.f32 %v2083, %v1823
  %v2085 = vadd.f32 %v2084, %v1824
  %v2086 = vadd.f32 %v2085, %v1825
  %v2087 = vadd.f32 %v2086, %v1826
  %v2088 = vadd.f32 %v2087, %v1827
  %v2089 = vadd.f32 %v2088, %v1828
  %v2090 = vadd.f32 %v2089, %v1829
  %v2091 = vrot.slane %v2090, 4
  %v2092 = vadd.f32 %v2090, %v2091
  %v2093 = vrot.slane %v2092, 2
  %v2094 = vadd.f32 %v2092, %v2093
  %v2095 = vrot.slane %v2094, 1
  %v2096 = vadd.f32 %v2094, %v2095
  %v2097 = vadd.f32 %v1830, %v1831
  %v2098 = vadd.f32 %v2097, %v1832
  %v2099 = vadd.f32 %v2098, %v1833
  %v2100 = vadd.f32 %v2099, %v1834
  %v2101 = vadd.f32 %v2100, %v1835
  %v2102 = vadd.f32 %v2101, %v1836
  %v2103 = vadd.f32 %v2102, %v1837
  %v2104 = vadd.f32 %v2103, %v1838
  %v2105 = vadd.f32 %v2104, %v1839
  %v2106 = vadd.f32 %v2105, %v1840
  %v2107 = vadd.f32 %v2106, %v1841
  %v2108 = vadd.f32 %v2107, %v1842
  %v2109 = vadd.f32 %v2108, %v1843
  %v2110 = vadd.f32 %v2109, %v1844
  %v2111 = vadd.f32 %v2110, %v1845
  %v2112 = vadd.f32 %v2111, %v1846
  %v2113 = vadd.f32 %v2112, %v1847
  %v2114 = vadd.f32 %v2113, %v1848
  %v2115 = vadd.f32 %v2114, %v1849
  %v2116 = vadd.f32 %v2115, %v1850
  %v2117 = vadd.f32 %v2116, %v1851
  %v2118 = vadd.f32 %v2117, %v1852
  %v2119 = vadd.f32 %v2118, %v1853
  %v2120 = vadd.f32 %v2119, %v1854
  %v2121 = vadd.f32 %v2120, %v1855
  %v2122 = vadd.f32 %v2121, %v1856
  %v2123 = vadd.f32 %v2122, %v1857
  %v2124 = vadd.f32 %v2123, %v1858
  %v2125 = vadd.f32 %v2124, %v1859
  %v2126 = vadd.f32 %v2125, %v1860
  %v2127 = vadd.f32 %v2126, %v1861
  %v2128 = vrot.slane %v2127, 4
  %v2129 = vadd.f32 %v2127, %v2128
  %v2130 = vrot.slane %v2129, 2
  %v2131 = vadd.f32 %v2129, %v2130
  %v2132 = vrot.slane %v2131, 1
  %v2133 = vadd.f32 %v2131, %v2132
  %v2134 = vadd.f32 %v1862, %v1863
  %v2135 = vadd.f32 %v2134, %v1864
  %v2136 = vadd.f32 %v2135, %v1865
  %v2137 = vadd.f32 %v2136, %v1866
  %v2138 = vadd.f32 %v2137, %v1867
  %v2139 = vadd.f32 %v2138, %v1868
  %v2140 = vadd.f32 %v2139, %v1869
  %v2141 = vadd.f32 %v2140, %v1870
  %v2142 = vadd.f32 %v2141, %v1871
  %v2143 = vadd.f32 %v2142, %v1872
  %v2144 = vadd.f32 %v2143, %v1873
  %v2145 = vadd.f32 %v2144, %v1874
  %v2146 = vadd.f32 %v2145, %v1875
  %v2147 = vadd.f32 %v2146, %v1876
  %v2148 = vadd.f32 %v2147, %v1877
  %v2149 = vadd.f32 %v2148, %v1878
  %v2150 = vadd.f32 %v2149, %v1879
  %v2151 = vadd.f32 %v2150, %v1880
  %v2152 = vadd.f32 %v2151, %v1881
  %v2153 = vadd.f32 %v2152, %v1882
  %v2154 = vadd.f32 %v2153, %v1883
  %v2155 = vadd.f32 %v2154, %v1884
  %v2156 = vadd.f32 %v2155, %v1885
  %v2157 = vadd.f32 %v2156, %v1886
  %v2158 = vadd.f32 %v2157, %v1887
  %v2159 = vadd.f32 %v2158, %v1888
  %v2160 = vadd.f32 %v2159, %v1889
  %v2161 = vadd.f32 %v2160, %v1890
  %v2162 = vadd.f32 %v2161, %v1891
  %v2163 = vadd.f32 %v2162, %v1892
  %v2164 = vadd.f32 %v2163, %v1893
  %v2165 = vrot.slane %v2164, 4
  %v2166 = vadd.f32 %v2164, %v2165
  %v2167 = vrot.slane %v2166, 2
  %v2168 = vadd.f32 %v2166, %v2167
  %v2169 = vrot.slane %v2168, 1
  %v2170 = vadd.f32 %v2168, %v2169
  %v2171 = vadd.f32 %v1894, %v1895
  %v2172 = vadd.f32 %v2171, %v1896
  %v2173 = vadd.f32 %v2172, %v1897
  %v2174 = vadd.f32 %v2173, %v1898
  %v2175 = vadd.f32 %v2174, %v1899
  %v2176 = vadd.f32 %v2175, %v1900
  %v2177 = vadd.f32 %v2176, %v1901
  %v2178 = vadd.f32 %v2177, %v1902
  %v2179 = vadd.f32 %v2178, %v1903
  %v2180 = vadd.f32 %v2179, %v1904
  %v2181 = vadd.f32 %v2180, %v1905
  %v2182 = vadd.f32 %v2181, %v1906
  %v2183 = vadd.f32 %v2182, %v1907
  %v2184 = vadd.f32 %v2183, %v1908
  %v2185 = vadd.f32 %v2184, %v1909
  %v2186 = vadd.f32 %v2185, %v1910
  %v2187 = vadd.f32 %v2186, %v1911
  %v2188 = vadd.f32 %v2187, %v1912
  %v2189 = vadd.f32 %v2188, %v1913
  %v2190 = vadd.f32 %v2189, %v1914
  %v2191 = vadd.f32 %v2190, %v1915
  %v2192 = vadd.f32 %v2191, %v1916
  %v2193 = vadd.f32 %v2192, %v1917
  %v2194 = vadd.f32 %v2193, %v1918
  %v2195 = vadd.f32 %v2194, %v1919
  %v2196 = vadd.f32 %v2195, %v1920
  %v2197 = vadd.f32 %v2196, %v1921
  %v2198 = vadd.f32 %v2197, %v1922
  %v2199 = vadd.f32 %v2198, %v1923
  %v2200 = vadd.f32 %v2199, %v1924
  %v2201 = vadd.f32 %v2200, %v1925
  %v2202 = vrot.slane %v2201, 4
  %v2203 = vadd.f32 %v2201, %v2202
  %v2204 = vrot.slane %v2203, 2
  %v2205 = vadd.f32 %v2203, %v2204
  %v2206 = vrot.slane %v2205, 1
  %v2207 = vadd.f32 %v2205, %v2206
  %v2208 = vadd.f32 %v1926, %v1927
  %v2209 = vadd.f32 %v2208, %v1928
  %v2210 = vadd.f32 %v2209, %v1929
  %v2211 = vadd.f32 %v2210, %v1930
  %v2212 = vadd.f32 %v2211, %v1931
  %v2213 = vadd.f32 %v2212, %v1932
  %v2214 = vadd.f32 %v2213, %v1933
  %v2215 = vadd.f32 %v2214, %v1934
  %v2216 = vadd.f32 %v2215, %v1935
  %v2217 = vadd.f32 %v2216, %v1936
  %v2218 = vadd.f32 %v2217, %v1937
  %v2219 = vadd.f32 %v2218, %v1938
  %v2220 = vadd.f32 %v2219, %v1939
  %v2221 = vadd.f32 %v2220, %v1940
  %v2222 = vadd.f32 %v2221, %v1941
  %v2223 = vadd.f32 %v2222, %v1942
  %v2224 = vadd.f32 %v2223, %v1943
  %v2225 = vadd.f32 %v2224, %v1944
  %v2226 = vadd.f32 %v2225, %v1945
  %v2227 = vadd.f32 %v2226, %v1946
  %v2228 = vadd.f32 %v2227, %v1947
  %v2229 = vadd.f32 %v2228, %v1948
  %v2230 = vadd.f32 %v2229, %v1949
  %v2231 = vadd.f32 %v2230, %v1950
  %v2232 = vadd.f32 %v2231, %v1951
  %v2233 = vadd.f32 %v2232, %v1952
  %v2234 = vadd.f32 %v2233, %v1953
  %v2235 = vadd.f32 %v2234, %v1954
  %v2236 = vadd.f32 %v2235, %v1955
  %v2237 = vadd.f32 %v2236, %v1956
  %v2238 = vadd.f32 %v2237, %v1957
  %v2239 = vrot.slane %v2238, 4
  %v2240 = vadd.f32 %v2238, %v2239
  %v2241 = vrot.slane %v2240, 2
  %v2242 = vadd.f32 %v2240, %v2241
  %v2243 = vrot.slane %v2242, 1
  %v2244 = vadd.f32 %v2242, %v2243
  %v2245 = vadd.f32 %v1958, %v1959
  %v2246 = vadd.f32 %v2245, %v1960
  %v2247 = vadd.f32 %v2246, %v1961
  %v2248 = vadd.f32 %v2247, %v1962
  %v2249 = vadd.f32 %v2248, %v1963
  %v2250 = vadd.f32 %v2249, %v1964
  %v2251 = vadd.f32 %v2250, %v1965
  %v2252 = vadd.f32 %v2251, %v1966
  %v2253 = vadd.f32 %v2252, %v1967
  %v2254 = vadd.f32 %v2253, %v1968
  %v2255 = vadd.f32 %v2254, %v1969
  %v2256 = vadd.f32 %v2255, %v1970
  %v2257 = vadd.f32 %v2256, %v1971
  %v2258 = vadd.f32 %v2257, %v1972
  %v2259 = vadd.f32 %v2258, %v1973
  %v2260 = vadd.f32 %v2259, %v1974
  %v2261 = vadd.f32 %v2260, %v1975
  %v2262 = vadd.f32 %v2261, %v1976
  %v2263 = vadd.f32 %v2262, %v1977
  %v2264 = vadd.f32 %v2263, %v1978
  %v2265 = vadd.f32 %v2264, %v1979
  %v2266 = vadd.f32 %v2265, %v1980
  %v2267 = vadd.f32 %v2266, %v1981
  %v2268 = vadd.f32 %v2267, %v1982
  %v2269 = vadd.f32 %v2268, %v1983
  %v2270 = vadd.f32 %v2269, %v1984
  %v2271 = vadd.f32 %v2270, %v1985
  %v2272 = vadd.f32 %v2271, %v1986
  %v2273 = vadd.f32 %v2272, %v1987
  %v2274 = vadd.f32 %v2273, %v1988
  %v2275 = vadd.f32 %v2274, %v1989
  %v2276 = vrot.slane %v2275, 4
  %v2277 = vadd.f32 %v2275, %v2276
  %v2278 = vrot.slane %v2277, 2
  %v2279 = vadd.f32 %v2277, %v2278
  %v2280 = vrot.slane %v2279, 1
  %v2281 = vadd.f32 %v2279, %v2280
  %v2282 = vadd.f32 %v1990, %v1991
  %v2283 = vadd.f32 %v2282, %v1992
  %v2284 = vadd.f32 %v2283, %v1993
  %v2285 = vadd.f32 %v2284, %v1994
  %v2286 = vadd.f32 %v2285, %v1995
  %v2287 = vadd.f32 %v2286, %v1996
  %v2288 = vadd.f32 %v2287, %v1997
  %v2289 = vadd.f32 %v2288, %v1998
  %v2290 = vadd.f32 %v2289, %v1999
  %v2291 = vadd.f32 %v2290, %v2000
  %v2292 = vadd.f32 %v2291, %v2001
  %v2293 = vadd.f32 %v2292, %v2002
  %v2294 = vadd.f32 %v2293, %v2003
  %v2295 = vadd.f32 %v2294, %v2004
  %v2296 = vadd.f32 %v2295, %v2005
  %v2297 = vadd.f32 %v2296, %v2006
  %v2298 = vadd.f32 %v2297, %v2007
  %v2299 = vadd.f32 %v2298, %v2008
  %v2300 = vadd.f32 %v2299, %v2009
  %v2301 = vadd.f32 %v2300, %v2010
  %v2302 = vadd.f32 %v2301, %v2011
  %v2303 = vadd.f32 %v2302, %v2012
  %v2304 = vadd.f32 %v2303, %v2013
  %v2305 = vadd.f32 %v2304, %v2014
  %v2306 = vadd.f32 %v2305, %v2015
  %v2307 = vadd.f32 %v2306, %v2016
  %v2308 = vadd.f32 %v2307, %v2017
  %v2309 = vadd.f32 %v2308, %v2018
  %v2310 = vadd.f32 %v2309, %v2019
  %v2311 = vadd.f32 %v2310, %v2020
  %v2312 = vadd.f32 %v2311, %v2021
  %v2313 = vrot.slane %v2312, 4
  %v2314 = vadd.f32 %v2312, %v2313
  %v2315 = vrot.slane %v2314, 2
  %v2316 = vadd.f32 %v2314, %v2315
  %v2317 = vrot.slane %v2316, 1
  %v2318 = vadd.f32 %v2316, %v2317
  %vm2327 = vcmask 1041409
  %v2328 = vsel %vm2327, %v2096, %v2059
  %vm2329 = vcmask 1042434
  %v2330 = vsel %vm2329, %v2133, %v2328
  %vm2331 = vcmask 1043459
  %v2332 = vsel %vm2331, %v2170, %v2330
  %vm2333 = vcmask 1044484
  %v2334 = vsel %vm2333, %v2207, %v2332
  %vm2335 = vcmask 1045509
  %v2336 = vsel %vm2335, %v2244, %v2334
  %vm2337 = vcmask 1046534
  %v2338 = vsel %vm2337, %v2281, %v2336
  %vm2339 = vcmask 1047559
  %v2340 = vsel %vm2339, %v2318, %v2338
  %v2342 = vadd.f32 %v2022, %v2340
  %2343 = vst [vmem:[#allocation2] sm:$0xff] %v2342
  // Predicated region
  $region26: #{timm_model_forward.1} parent=0 // pred_check
    %p2344 = pneg %p20
  $region27: #{timm_model_forward.1} parent=0 // pred_check_branch
    %2346 = sbr.rel (%p2344) target = $region29
  $region28: #{timm_model_forward.1} parent=0 // pred_region
    %v2347 = vld [vmem:[#allocation2] sm:$0xff]
    %v2348 = vmul.f32 %v2347, 0.00390625
    %v2349 = vld [vmem:[%s3] sm:$0xff]
    %v2350 = vld [vmem:[%s3 + $0x8] sm:$0xff]
    %v2351 = vld [vmem:[%s3 + $0x10] sm:$0xff]
    %v2352 = vld [vmem:[%s3 + $0x18] sm:$0xff]
    %v2353 = vld [vmem:[%s3 + $0x20] sm:$0xff]
    %v2354 = vld [vmem:[%s3 + $0x28] sm:$0xff]
    %v2355 = vld [vmem:[%s3 + $0x30] sm:$0xff]
    %v2356 = vld [vmem:[%s3 + $0x38] sm:$0xff]
    %v2357 = vld [vmem:[%s3 + $0x40] sm:$0xff]
    %v2358 = vld [vmem:[%s3 + $0x48] sm:$0xff]
    %v2359 = vld [vmem:[%s3 + $0x50] sm:$0xff]
    %v2360 = vld [vmem:[%s3 + $0x58] sm:$0xff]
    %v2361 = vld [vmem:[%s3 + $0x60] sm:$0xff]
    %v2362 = vld [vmem:[%s3 + $0x68] sm:$0xff]
    %v2363 = vld [vmem:[%s3 + $0x70] sm:$0xff]
    %v2364 = vld [vmem:[%s3 + $0x78] sm:$0xff]
    %v2365 = vld [vmem:[%s4] sm:$0x1]
    %v2367 = vperm.slane %v2365, 0
    %2369 = vmatpush.msra.mxu0 %v2364
    %2370 = vmatpush.msra.mxu0 %v2363
    %2371 = vmatpush.msra.mxu0 %v2362
    %2372 = vmatpush.msra.mxu0 %v2361
    %2373 = vmatpush.msra.mxu0 %v2360
    %2374 = vmatpush.msra.mxu0 %v2359
    %2375 = vmatpush.msra.mxu0 %v2358
    %2376 = vmatpush.msra.mxu0 %v2357
    %2377 = vmatpush.msra.mxu0 %v2356
    %2378 = vmatpush.msra.mxu0 %v2355
    %2379 = vmatpush.msra.mxu0 %v2354
    %2380 = vmatpush.msra.mxu0 %v2353
    %2381 = vmatpush.msra.mxu0 %v2352
    %2382 = vmatpush.msra.mxu0 %v2351
    %2383 = vmatpush.msra.mxu0 %v2350
    %2384 = vmatpush.msra.mxu0 %v2349
    %2385 = vmatmul.f32.gmra.mxu0 %v2348
    %v2386 = vpop.f32.mrf.mxu0
    %v2387 = vadd.f32 %v2367, %v2386
    %2388 = vdwg.mxu0
    %2389 = vst [vmem:[%s5] sm:$0xff] %v2387
  $region29: #{timm_model_forward.1} parent=0 // pred_fallthru
    _
  // Predicated region
  $region30: #{timm_model_forward.1} parent=0 // pred_check
    _
  $region31: #{timm_model_forward.1} parent=0 // pred_check_branch
    %2391 = sbr.rel (0) target = $region33
  $region32: #{timm_model_forward.1} parent=0 // pred_region
    _
  $region33: #{timm_model_forward.1} parent=0 // pred_fallthru
    _
  // Predicated region
  $region34: #{timm_model_forward.1} parent=0 // pred_check
    _
  $region35: #{timm_model_forward.1} parent=0 // pred_check_branch
    %2393 = sbr.rel (0) target = $region37
  $region36: #{timm_model_forward.1} parent=0 // pred_region
    _
  $region37: #{timm_model_forward.1} parent=0 // pred_fallthru
    _

</llo_original>
